<compile_context>
chip_gen: v6e
topology: v6e:2x2x1
jax: 0.10.0
libtpu: 0.0.40
codegen_flags: <defaults>
</compile_context>

<pallas_src>
import functools

import jax
import jax.numpy as jnp
from jax.experimental import pallas as pl
from jax.experimental.pallas import tpu as pltpu

PAD = 128          # lane-dense width for hidden / classes
NEG_PAD_BIAS = -1e30


# ---------------------------------------------------------------------------
# kernel
# ---------------------------------------------------------------------------

def _discriminator_kernel(z_ref, w_in_ref, w_rest_ref, b_ref,
                          fl_ref, prob_ref, *, num_hidden_layers):
    """One batch tile.

    z_ref      : (Bt, inp_dim) bf16
    w_in_ref   : (inp_dim, 128) bf16
    w_rest_ref : (L+1, 128, 128) bf16   (L hidden layers + fc_out)
    b_ref      : (L+2, 1, 128) f32
    fl_ref     : (2, Bt, 128) bf16      ([0]=features, [1]=logits, padded)
    prob_ref   : (Bt, 128) f32          (softmax over padded slab; pad cols == 0)
    """
    L = num_hidden_layers

    # fc_in + ReLU   (dropout == identity in eval)
    h = jnp.dot(z_ref[...], w_in_ref[...],
                preferred_element_type=jnp.float32) + b_ref[0]
    h = jnp.maximum(h, 0.0)

    # hidden Linear -> ReLU stack (statically unrolled; L is small)
    for l in range(L):
        h = jnp.dot(h.astype(jnp.bfloat16), w_rest_ref[l],
                    preferred_element_type=jnp.float32) + b_ref[l + 1]
        h = jnp.maximum(h, 0.0)

    fl_ref[0, :, :] = h.astype(fl_ref.dtype)   # padded hidden cols are exactly 0

    # fc_out; padded class cols carry a -1e30 bias -> exp() == 0 below
    logits = jnp.dot(h.astype(jnp.bfloat16), w_rest_ref[L],
                     preferred_element_type=jnp.float32) + b_ref[L + 1]
    fl_ref[1, :, :] = logits.astype(fl_ref.dtype)

    # softmax over last dim (nn.Softmax() on 2-D input -> dim=1), exact divide
    m = jnp.max(logits, axis=-1, keepdims=True)
    e = jnp.exp(logits - m)
    denom = jnp.sum(e, axis=-1, keepdims=True)
    prob_ref[...] = e / denom


# ---------------------------------------------------------------------------
# wrapper
# ---------------------------------------------------------------------------

def _pick_batch_tile(B):
    """Few, large grid steps (amortize per-step overhead and weight pushes),
    but keep >= 2 steps when B allows so v7x's two TensorCores both get work."""
    half = -(-B // 2)                 # ceil(B / 2)
    tile = -(-half // 128) * 128      # round up to a lane/sublane-friendly 128
    return max(128, min(1024, tile))


def discriminator_forward(z, w_in, w_rest, b_all, *, num_hidden_layers,
                          hidden_size, num_classes, batch_tile=None,
                          return_padded=False):
    """z: (B, inp_dim) any float dtype.
    w_in: (inp_dim, 128) bf16.  w_rest: (L+1, 128, 128) bf16.  b_all: (L+2,1,128) f32.
    Returns (features, logits, prob).  With return_padded=True, returns the
    lane-dense padded slabs (B_pad, 128) without any slice copies."""
    B, inp_dim = z.shape
    L = num_hidden_layers

    if batch_tile is None:
        batch_tile = _pick_batch_tile(B)
    n_steps = pl.cdiv(B, batch_tile)
    b_pad = n_steps * batch_tile

    # z consumed as bf16 by the MXU anyway; pad batch rows only (no lane pad).
    zb = z.astype(jnp.bfloat16)
    if b_pad != B:
        zb = jnp.pad(zb, ((0, b_pad - B), (0, 0)))

    grid = (n_steps,)

    in_specs = [
        pl.BlockSpec((batch_tile, inp_dim), lambda i: (i, 0)),      # z tile (bf16)
        pl.BlockSpec((inp_dim, PAD), lambda i: (0, 0)),             # fc_in weight (resident)
        pl.BlockSpec((L + 1, PAD, PAD), lambda i: (0, 0, 0)),       # hidden+out weights (resident)
        pl.BlockSpec((L + 2, 1, PAD), lambda i: (0, 0, 0)),         # biases (resident)
    ]
    out_specs = (
        pl.BlockSpec((2, batch_tile, PAD), lambda i: (0, i, 0)),    # fused feat+logits (bf16)
        pl.BlockSpec((batch_tile, PAD), lambda i: (i, 0)),          # prob (f32)
    )
    out_shape = (
        jax.ShapeDtypeStruct((2, b_pad, PAD), jnp.bfloat16),
        jax.ShapeDtypeStruct((b_pad, PAD), jnp.float32),
    )

    # advisory cost hint so XLA schedules this tiny call sensibly
    flops = 2 * b_pad * PAD * (inp_dim + (L + 1) * PAD)
    bytes_accessed = (b_pad * inp_dim * 2            # z read (bf16)
                      + inp_dim * PAD * 2            # w_in
                      + (L + 1) * PAD * PAD * 2      # w_rest
                      + (L + 2) * PAD * 4            # biases
                      + 2 * b_pad * PAD * 2          # fused bf16 writeback
                      + b_pad * PAD * 4)             # prob f32 writeback
    cost = pl.CostEstimate(flops=flops, transcendentals=b_pad * PAD,
                           bytes_accessed=bytes_accessed)

    kernel = functools.partial(_discriminator_kernel,
                               num_hidden_layers=num_hidden_layers)

    fl_p, prob_p = pl.pallas_call(
        kernel,
        grid=grid,
        out_shape=out_shape,
        in_specs=in_specs,
        out_specs=out_specs,
        compiler_params=pltpu.CompilerParams(
            dimension_semantics=("parallel",),
            vmem_limit_bytes=32 * 1024 * 1024),
        cost_estimate=cost,
    )(zb, w_in, w_rest, b_all)

    if return_padded:
        # lane-dense padded slabs; caller is responsible for the [:B,:width]
        # interpretation (logits pad columns hold -1e30 by construction).
        return fl_p[0], fl_p[1], prob_p

    # slice back to the true module widths (small, only done when requested)
    features = fl_p[0, :B, :hidden_size].astype(jnp.float32)
    logits = fl_p[1, :B, :num_classes].astype(jnp.float32)
    prob = prob_p[:B, :num_classes]
    return features, logits, prob


# ---------------------------------------------------------------------------
# parameter construction / packing
# ---------------------------------------------------------------------------

def init_params(key, inp_dim, hidden_size, num_hidden_layers, opt_classes):
    """Deterministic synthetic init (uniform, roughly PyTorch Linear scale).
    Stored as (in, out): y = x @ W + b  (== PyTorch x @ W_pt.T + b)."""
    ks = jax.random.split(key, 6)
    C = opt_classes + 1
    L = num_hidden_layers

    def u(k, shape, fan_in):
        bound = 1.0 / jnp.sqrt(fan_in)
        return jax.random.uniform(k, shape, jnp.float32, -bound, bound)

    return {
        "w_in": u(ks[0], (inp_dim, hidden_size), inp_dim),
        "b_in": u(ks[1], (hidden_size,), inp_dim),
        "w_h": (u(ks[2], (L, hidden_size, hidden_size), hidden_size)
                if L > 0 else jnp.zeros((0, hidden_size, hidden_size), jnp.float32)),
        "b_h": (u(ks[3], (L, hidden_size), hidden_size)
                if L > 0 else jnp.zeros((0, hidden_size), jnp.float32)),
        "w_out": u(ks[4], (hidden_size, C), hidden_size),
        "b_out": u(ks[5], (C,), hidden_size),
    }


def pack_params(params, inp_dim, hidden_size, num_hidden_layers, num_classes):
    """Pack into: w_in (inp_dim,128) bf16, w_rest (L+1,128,128) bf16,
    b_all (L+2,1,128) f32 (padded class cols get a -1e30 bias)."""
    L = num_hidden_layers

    w_in = jnp.zeros((inp_dim, PAD), jnp.float32)
    w_in = w_in.at[:, :hidden_size].set(params["w_in"])

    w_rest = jnp.zeros((L + 1, PAD, PAD), jnp.float32)
    for l in range(L):
        w_rest = w_rest.at[l, :hidden_size, :hidden_size].set(params["w_h"][l])
    w_rest = w_rest.at[L, :hidden_size, :num_classes].set(params["w_out"])

    b_all = jnp.zeros((L + 2, 1, PAD), jnp.float32)
    b_all = b_all.at[0, 0, :hidden_size].set(params["b_in"])
    for l in range(L):
        b_all = b_all.at[1 + l, 0, :hidden_size].set(params["b_h"][l])
    # padded class columns get a huge negative bias -> softmax pad prob == 0
    b_all = b_all.at[L + 1, 0, :].set(NEG_PAD_BIAS)
    b_all = b_all.at[L + 1, 0, :num_classes].set(params["b_out"])

    return w_in.astype(jnp.bfloat16), w_rest.astype(jnp.bfloat16), b_all


# ---------------------------------------------------------------------------
# plain-JAX reference (same bf16-input / f32-accumulate math as the kernel)
# ---------------------------------------------------------------------------

def reference_forward(z, w_in, w_rest, b_all, num_hidden_layers,
                      hidden_size, num_classes):
    L = num_hidden_layers
    h = jnp.maximum(jnp.dot(z.astype(jnp.bfloat16), w_in,
                            preferred_element_type=jnp.float32) + b_all[0], 0.0)
    for l in range(L):
        h = jnp.maximum(jnp.dot(h.astype(jnp.bfloat16), w_rest[l],
                                preferred_element_type=jnp.float32)
                        + b_all[l + 1], 0.0)
    logits = (jnp.dot(h.astype(jnp.bfloat16), w_rest[L],
                      preferred_element_type=jnp.float32) + b_all[L + 1])
    logits = logits[:, :num_classes]
    prob = jax.nn.softmax(logits, axis=-1)
    return h[:, :hidden_size], logits, prob


if __name__ == "__main__":
    # conf: inp_dim=16, hidden_size=32, num_hidden_layers=2, opt_classes=4, dropout=0.1
    B, INP_DIM, HIDDEN, N_LAYERS, OPT_CLASSES = 256, 16, 32, 2, 4
    C = OPT_CLASSES + 1

    key = jax.random.PRNGKey(0)
    kz, kp = jax.random.split(key)
    z = jax.random.normal(kz, (B, INP_DIM), jnp.float32)
    params = init_params(kp, INP_DIM, HIDDEN, N_LAYERS, OPT_CLASSES)
    w_in, w_rest, b_all = pack_params(params, INP_DIM, HIDDEN, N_LAYERS, C)

    features, logits, prob = discriminator_forward(
        z, w_in, w_rest, b_all,
        num_hidden_layers=N_LAYERS, hidden_size=HIDDEN, num_classes=C)
    jax.block_until_ready((features, logits, prob))

    # correctness check against a plain-JAX reference with the same math path
    f_ref, l_ref, p_ref = reference_forward(
        z, w_in, w_rest, b_all, N_LAYERS, HIDDEN, C)

    assert features.shape == (B, HIDDEN)
    assert logits.shape == (B, C)
    assert prob.shape == (B, C)
    # features / logits are stored as bf16 by the kernel -> bf16-level tolerance
    assert jnp.allclose(features, f_ref, atol=1e-2, rtol=1e-2)
    assert jnp.allclose(logits, l_ref, atol=1e-2, rtol=1e-2)
    # prob is f32 with an exact softmax divide -> tight tolerance
    assert jnp.allclose(prob, p_ref, atol=2e-3, rtol=2e-3)
    assert jnp.allclose(jnp.sum(prob, axis=-1), 1.0, atol=1e-3)

    print("KERNEL_OK")
</pallas_src>

<mosaic_0001>
module attributes {stable_mosaic.version = 11 : i64} {
  func.func @_discriminator_kernel(%arg0: i32, %arg1: memref<128x16xbf16, #tpu.memory_space<vmem>>, %arg2: memref<16x128xbf16, #tpu.memory_space<vmem>>, %arg3: memref<3x128x128xbf16, #tpu.memory_space<vmem>>, %arg4: memref<4x1x128xf32, #tpu.memory_space<vmem>>, %arg5: memref<2x128x128xbf16, #tpu.memory_space<vmem>>, %arg6: memref<128x128xf32, #tpu.memory_space<vmem>>) attributes {dimension_semantics = [#tpu.dimension_semantics<parallel>], iteration_bounds = array<i64: 2>, scalar_prefetch = 0 : i64, scratch_operands = 0 : i64, tpu.core_type = #tpu.core_type<tc>, window_params = [{transform_indices = @transform_0, window_bounds = array<i64: 128, 16>}, {pipeline_mode = #tpu.pipeline_mode<synchronous>, transform_indices = @transform_1, window_bounds = array<i64: 16, 128>}, {pipeline_mode = #tpu.pipeline_mode<synchronous>, transform_indices = @transform_2, window_bounds = array<i64: 3, 128, 128>}, {pipeline_mode = #tpu.pipeline_mode<synchronous>, transform_indices = @transform_3, window_bounds = array<i64: 4, 1, 128>}, {transform_indices = @transform_4, window_bounds = array<i64: 2, 128, 128>}, {transform_indices = @transform_5, window_bounds = array<i64: 128, 128>}]} {
    %c0 = arith.constant 0 : index
    %c0_0 = arith.constant 0 : index
    %0 = vector.load %arg1[%c0, %c0_0] : memref<128x16xbf16, #tpu.memory_space<vmem>>, vector<128x16xbf16>
    %c0_1 = arith.constant 0 : index
    %c0_2 = arith.constant 0 : index
    %1 = vector.load %arg2[%c0_1, %c0_2] : memref<16x128xbf16, #tpu.memory_space<vmem>>, vector<16x128xbf16>
    %cst = arith.constant dense<0.000000e+00> : vector<128x128xf32>
    %2 = tpu.matmul %0, %1, %cst {dimension_numbers = #tpu.dot_dimension_numbers<[1], [0], [0], [1], [0, 0, 1, 1], [], []>} : vector<128x16xbf16>, vector<16x128xbf16>, vector<128x128xf32> -> vector<128x128xf32>
    %c0_3 = arith.constant 0 : index
    %c0_4 = arith.constant 0 : index
    %c0_5 = arith.constant 0 : index
    %3 = vector.load %arg4[%c0_3, %c0_4, %c0_5] : memref<4x1x128xf32, #tpu.memory_space<vmem>>, vector<1x1x128xf32>
    %4 = vector.shape_cast %3 : vector<1x1x128xf32> to vector<1x128xf32>
    %5 = vector.broadcast %4 : vector<1x128xf32> to vector<128x128xf32>
    %6 = arith.addf %2, %5 : vector<128x128xf32>
    %cst_6 = arith.constant 0.000000e+00 : f32
    %7 = vector.broadcast %cst_6 : f32 to vector<128x128xf32>
    %8 = arith.maximumf %6, %7 : vector<128x128xf32>
    %9 = arith.truncf %8 : vector<128x128xf32> to vector<128x128xbf16>
    %c0_7 = arith.constant 0 : index
    %c0_8 = arith.constant 0 : index
    %c0_9 = arith.constant 0 : index
    %10 = vector.load %arg3[%c0_7, %c0_8, %c0_9] : memref<3x128x128xbf16, #tpu.memory_space<vmem>>, vector<1x128x128xbf16>
    %11 = vector.shape_cast %10 : vector<1x128x128xbf16> to vector<128x128xbf16>
    %cst_10 = arith.constant dense<0.000000e+00> : vector<128x128xf32>
    %12 = tpu.matmul %9, %11, %cst_10 {dimension_numbers = #tpu.dot_dimension_numbers<[1], [0], [0], [1], [0, 0, 1, 1], [], []>} : vector<128x128xbf16>, vector<128x128xbf16>, vector<128x128xf32> -> vector<128x128xf32>
    %c1 = arith.constant 1 : index
    %c0_11 = arith.constant 0 : index
    %c0_12 = arith.constant 0 : index
    %13 = vector.load %arg4[%c1, %c0_11, %c0_12] : memref<4x1x128xf32, #tpu.memory_space<vmem>>, vector<1x1x128xf32>
    %14 = vector.shape_cast %13 : vector<1x1x128xf32> to vector<1x128xf32>
    %15 = vector.broadcast %14 : vector<1x128xf32> to vector<128x128xf32>
    %16 = arith.addf %12, %15 : vector<128x128xf32>
    %cst_13 = arith.constant 0.000000e+00 : f32
    %17 = vector.broadcast %cst_13 : f32 to vector<128x128xf32>
    %18 = arith.maximumf %16, %17 : vector<128x128xf32>
    %19 = arith.truncf %18 : vector<128x128xf32> to vector<128x128xbf16>
    %c1_14 = arith.constant 1 : index
    %c0_15 = arith.constant 0 : index
    %c0_16 = arith.constant 0 : index
    %20 = vector.load %arg3[%c1_14, %c0_15, %c0_16] : memref<3x128x128xbf16, #tpu.memory_space<vmem>>, vector<1x128x128xbf16>
    %21 = vector.shape_cast %20 : vector<1x128x128xbf16> to vector<128x128xbf16>
    %cst_17 = arith.constant dense<0.000000e+00> : vector<128x128xf32>
    %22 = tpu.matmul %19, %21, %cst_17 {dimension_numbers = #tpu.dot_dimension_numbers<[1], [0], [0], [1], [0, 0, 1, 1], [], []>} : vector<128x128xbf16>, vector<128x128xbf16>, vector<128x128xf32> -> vector<128x128xf32>
    %c2 = arith.constant 2 : index
    %c0_18 = arith.constant 0 : index
    %c0_19 = arith.constant 0 : index
    %23 = vector.load %arg4[%c2, %c0_18, %c0_19] : memref<4x1x128xf32, #tpu.memory_space<vmem>>, vector<1x1x128xf32>
    %24 = vector.shape_cast %23 : vector<1x1x128xf32> to vector<1x128xf32>
    %25 = vector.broadcast %24 : vector<1x128xf32> to vector<128x128xf32>
    %26 = arith.addf %22, %25 : vector<128x128xf32>
    %cst_20 = arith.constant 0.000000e+00 : f32
    %27 = vector.broadcast %cst_20 : f32 to vector<128x128xf32>
    %28 = arith.maximumf %26, %27 : vector<128x128xf32>
    %29 = arith.truncf %28 : vector<128x128xf32> to vector<128x128xbf16>
    %c0_21 = arith.constant 0 : index
    %c0_22 = arith.constant 0 : index
    %c0_23 = arith.constant 0 : index
    %30 = vector.load %arg5[%c0_21, %c0_22, %c0_23] : memref<2x128x128xbf16, #tpu.memory_space<vmem>>, vector<1x128x128xbf16>
    %31 = vector.shape_cast %30 : vector<1x128x128xbf16> to vector<128x128xbf16>
    %32 = vector.shape_cast %29 : vector<128x128xbf16> to vector<1x128x128xbf16>
    tpu.vector_store %arg5[%c0_21, %c0_22, %c0_23], %32 {strides = array<i32>} : memref<2x128x128xbf16, #tpu.memory_space<vmem>>, vector<1x128x128xbf16>,
    %33 = arith.truncf %28 : vector<128x128xf32> to vector<128x128xbf16>
    %c2_24 = arith.constant 2 : index
    %c0_25 = arith.constant 0 : index
    %c0_26 = arith.constant 0 : index
    %34 = vector.load %arg3[%c2_24, %c0_25, %c0_26] : memref<3x128x128xbf16, #tpu.memory_space<vmem>>, vector<1x128x128xbf16>
    %35 = vector.shape_cast %34 : vector<1x128x128xbf16> to vector<128x128xbf16>
    %cst_27 = arith.constant dense<0.000000e+00> : vector<128x128xf32>
    %36 = tpu.matmul %33, %35, %cst_27 {dimension_numbers = #tpu.dot_dimension_numbers<[1], [0], [0], [1], [0, 0, 1, 1], [], []>} : vector<128x128xbf16>, vector<128x128xbf16>, vector<128x128xf32> -> vector<128x128xf32>
    %c3 = arith.constant 3 : index
    %c0_28 = arith.constant 0 : index
    %c0_29 = arith.constant 0 : index
    %37 = vector.load %arg4[%c3, %c0_28, %c0_29] : memref<4x1x128xf32, #tpu.memory_space<vmem>>, vector<1x1x128xf32>
    %38 = vector.shape_cast %37 : vector<1x1x128xf32> to vector<1x128xf32>
    %39 = vector.broadcast %38 : vector<1x128xf32> to vector<128x128xf32>
    %40 = arith.addf %36, %39 : vector<128x128xf32>
    %41 = arith.truncf %40 : vector<128x128xf32> to vector<128x128xbf16>
    %c1_30 = arith.constant 1 : index
    %c0_31 = arith.constant 0 : index
    %c0_32 = arith.constant 0 : index
    %42 = vector.load %arg5[%c1_30, %c0_31, %c0_32] : memref<2x128x128xbf16, #tpu.memory_space<vmem>>, vector<1x128x128xbf16>
    %43 = vector.shape_cast %42 : vector<1x128x128xbf16> to vector<128x128xbf16>
    %44 = vector.shape_cast %41 : vector<128x128xbf16> to vector<1x128x128xbf16>
    tpu.vector_store %arg5[%c1_30, %c0_31, %c0_32], %44 {strides = array<i32>} : memref<2x128x128xbf16, #tpu.memory_space<vmem>>, vector<1x128x128xbf16>,
    %cst_33 = arith.constant dense<0xFF800000> : vector<128xf32>
    %45 = vector.multi_reduction <maximumf>, %40, %cst_33 [1] : vector<128x128xf32> to vector<128xf32>
    %46 = vector.shape_cast %45 : vector<128xf32> to vector<128x1xf32>
    %47 = vector.broadcast %46 : vector<128x1xf32> to vector<128x128xf32>
    %48 = arith.subf %40, %47 : vector<128x128xf32>
    %49 = math.exp %48 : vector<128x128xf32>
    %cst_34 = arith.constant dense<0.000000e+00> : vector<128xf32>
    %50 = vector.multi_reduction <add>, %49, %cst_34 [1] : vector<128x128xf32> to vector<128xf32>
    %51 = vector.shape_cast %50 : vector<128xf32> to vector<128x1xf32>
    %52 = vector.broadcast %51 : vector<128x1xf32> to vector<128x128xf32>
    %53 = arith.divf %49, %52 : vector<128x128xf32>
    %c0_35 = arith.constant 0 : index
    %c0_36 = arith.constant 0 : index
    %54 = vector.load %arg6[%c0_35, %c0_36] : memref<128x128xf32, #tpu.memory_space<vmem>>, vector<128x128xf32>
    tpu.vector_store %arg6[%c0_35, %c0_36], %53 {strides = array<i32>} : memref<128x128xf32, #tpu.memory_space<vmem>>, vector<128x128xf32>,
    return
  }
  func.func @transform_0(%arg0: i32) -> (i32, i32) {
    %c0_i32 = arith.constant 0 : i32
    %c0_i32_0 = arith.constant 0 : i32
    return %arg0, %c0_i32 : i32, i32
  }
  func.func @transform_1(%arg0: i32) -> (i32, i32) {
    %c0_i32 = arith.constant 0 : i32
    %c0_i32_0 = arith.constant 0 : i32
    %c0_i32_1 = arith.constant 0 : i32
    return %c0_i32, %c0_i32_0 : i32, i32
  }
  func.func @transform_2(%arg0: i32) -> (i32, i32, i32) {
    %c0_i32 = arith.constant 0 : i32
    %c0_i32_0 = arith.constant 0 : i32
    %c0_i32_1 = arith.constant 0 : i32
    %c0_i32_2 = arith.constant 0 : i32
    return %c0_i32, %c0_i32_0, %c0_i32_1 : i32, i32, i32
  }
  func.func @transform_3(%arg0: i32) -> (i32, i32, i32) {
    %c0_i32 = arith.constant 0 : i32
    %c0_i32_0 = arith.constant 0 : i32
    %c0_i32_1 = arith.constant 0 : i32
    %c0_i32_2 = arith.constant 0 : i32
    return %c0_i32, %c0_i32_0, %c0_i32_1 : i32, i32, i32
  }
  func.func @transform_4(%arg0: i32) -> (i32, i32, i32) {
    %c0_i32 = arith.constant 0 : i32
    %c0_i32_0 = arith.constant 0 : i32
    %c0_i32_1 = arith.constant 0 : i32
    return %c0_i32, %arg0, %c0_i32_0 : i32, i32, i32
  }
  func.func @transform_5(%arg0: i32) -> (i32, i32) {
    %c0_i32 = arith.constant 0 : i32
    %c0_i32_0 = arith.constant 0 : i32
    return %arg0, %c0_i32 : i32, i32
  }
}

</mosaic_0001>

<llo_original>
// kernel: tpu_custom_call.1
$region0: #{tpu_custom_call.1}
  #allocation0 [shape = 'u32[]', space=smem, size = 0x4, offset = 0x4, fixed_abs, tag = 'smem constant byte address 0x4 - core index']
  #allocation1 [shape = 'u32[144,128]{1,0:T(1,128)}', space=vmem, size = 0x12000, scoped, tag = 'internal scratch']
  #allocation8 [shape = 's32[]', space=sflag, size = 0x4, offset = 0, fixed_abs, tag = 'sflag constant byte address 0x0 - dummy sync flag']
  %s0 = inlined_call_operand.vmem [shape: bf16[256,16], index: 0, kind: input, shape index: {}]
  %s1 = inlined_call_operand.vmem [shape: bf16[16,128], index: 1, kind: input, shape index: {}]
  %s2 = inlined_call_operand.hbm [shape: bf16[3,128,128], index: 2, kind: input, shape index: {}]
  %s3 = inlined_call_operand.vmem [shape: f32[4,1,128], index: 3, kind: input, shape index: {}]
  %s4 = inlined_call_operand.hbm [shape: bf16[2,256,128], index: 4, kind: output, shape index: {0}]
  %s5 = inlined_call_operand.hbm [shape: f32[256,128], index: 5, kind: output, shape index: {1}]
  %6 = xla_tuple %s4, %s5
  %s7 = sld [smem:[#allocation0]]
  $region61: #{tpu_custom_call.1} parent=0
    _
  %s9 = ssub.s32 1, %s7
  %s10 = scalar_select 0, %s9, %s7
  $region1: #{tpu_custom_call.1} parent=0
    #allocation2 [shape = 'u8[98304]{0}', space=vmem, size = 0x18000, scoped, tag = 'input window, operand 2, single buffered']
    #allocation3 [shape = 's32[2]{0}', space=sflag, size = 0x8, scoped, tag = 'scoped memory for tpu_custom_call.1']
    #allocation4 [shape = 's32[2]{0}', space=sflag, size = 0x8, scoped, tag = 'scoped memory for tpu_custom_call.1']
    #allocation5 [shape = 'u8[131072]{0}', space=vmem, size = 0x20000, scoped, tag = 'output window, operand 0']
    #allocation6 [shape = 'u8[131072]{0}', space=vmem, size = 0x20000, scoped, tag = 'output window, operand 1']
    #allocation7 [shape = 's32[2]{0}', space=sflag, size = 0x8, scoped, tag = 'scoped memory for tpu_custom_call.1']
    %11 = vsyncpa [#allocation3], 0
    %12 = vsyncpa [#allocation4], 0
    %s13 = scalar_lea.sflag [#allocation4], 1
    %14 = vsyncpa %s13, 0
    %15 = vsyncpa [#allocation7], 0
    %s16 = scalar_lea.sflag [#allocation7], 1
    %17 = vsyncpa %s16, 0
    loop: start=0, step=1, limit=4
    $region2: #{tpu_custom_call.1} parent=1 // loop_pre_header
      _
    $region3: #{tpu_custom_call.1} parent=1 // loop_header
      %s19 = sphi 0, %s23
      %p20 = scmp.ge.s32.totalorder %s19, 4
      %s29 = sphi 0, %s31
      %s32 = sphi 0, %s29
      %s33 = sphi 0, %s32
      %s49 = sphi 0, %s33
      %s53 = sphi 0, %s53
      %s55 = sphi 0, %s53
      %s56 = sphi 0, %s55
      %s70 = sphi 0, %s56
      %s74 = sphi 0, %s74
      %s76 = sphi 0, %s74
      %s77 = sphi 0, %s76
      %s91 = sphi 0, %s77
      %s95 = sphi 0, %s95
      %s97 = sphi 0, %s95
      %s98 = sphi 0, %s97
      %s112 = sphi 0, %s98
      %s118 = sphi 0, %s120
      %s121 = sphi 0, %s118
      %s122 = sphi 0, %s121
      %s138 = sphi 0, %s122
      %s144 = sphi 0, %s146
      %s147 = sphi 0, %s144
      %s148 = sphi 0, %s147
      %s164 = sphi 0, %s148
    $region4: #{tpu_custom_call.1} parent=1 // loop_header_branch
      %22 = sbr.rel (%p20) target = $region8
    $region5: #{tpu_custom_call.1} parent=1 // loop_body
      %s24 = ssub.s32 %s19, 1
      %s25 = ssub.s32 %s19, 2
      %s26 = sadd.s32 %s19, 1
      %s27 = ssub.s32 %s19, %s26
      %p28 = scmp.eq.s32.totalorder %s27, 0
      %s30 = sadd.s32 %s29, 1
      %s31 = scalar_select %p28, %s29, %s30
      %p34 = pneg %p28
      %p35 = scmp.eq.s32.totalorder %s19, 1
      %p36 = por %p34, %p35
      %p37 = scmp.ne.s32.totalorder %s29, %s32
      %p38 = scmp.eq.s32.totalorder %s19, 0
      %p39 = por %p37, %p38
      %p40 = scmp.ne.s32.totalorder %s29, %s32
      %p41 = scmp.eq.s32.totalorder %s24, 1
      %p42 = por %p40, %p41
      %p43 = scmp.ne.s32.totalorder %s32, %s33
      %p44 = scmp.eq.s32.totalorder %s24, 0
      %p45 = por %p43, %p44
      %p46 = scmp.ne.s32.totalorder %s32, %s33
      %p47 = scmp.eq.s32.totalorder %s25, 1
      %p48 = por %p46, %p47
      %p50 = scmp.ne.s32.totalorder %s33, %s49
      %p51 = scmp.eq.s32.totalorder %s25, 0
      %p52 = por %p50, %p51
      %s54 = sadd.s32 %s53, 1
      %p57 = scmp.eq.s32.totalorder %s19, 1
      %p58 = scmp.ne.s32.totalorder %s53, %s55
      %p59 = scmp.eq.s32.totalorder %s19, 0
      %p60 = por %p58, %p59
      %p61 = scmp.ne.s32.totalorder %s53, %s55
      %p62 = scmp.eq.s32.totalorder %s24, 1
      %p63 = por %p61, %p62
      %p64 = scmp.ne.s32.totalorder %s55, %s56
      %p65 = scmp.eq.s32.totalorder %s24, 0
      %p66 = por %p64, %p65
      %p67 = scmp.ne.s32.totalorder %s55, %s56
      %p68 = scmp.eq.s32.totalorder %s25, 1
      %p69 = por %p67, %p68
      %p71 = scmp.ne.s32.totalorder %s56, %s70
      %p72 = scmp.eq.s32.totalorder %s25, 0
      %p73 = por %p71, %p72
      %s75 = sadd.s32 %s74, 1
      %p78 = scmp.eq.s32.totalorder %s19, 1
      %p79 = scmp.ne.s32.totalorder %s74, %s76
      %p80 = scmp.eq.s32.totalorder %s19, 0
      %p81 = por %p79, %p80
      %p82 = scmp.ne.s32.totalorder %s74, %s76
      %p83 = scmp.eq.s32.totalorder %s24, 1
      %p84 = por %p82, %p83
      %p85 = scmp.ne.s32.totalorder %s76, %s77
      %p86 = scmp.eq.s32.totalorder %s24, 0
      %p87 = por %p85, %p86
      %p88 = scmp.ne.s32.totalorder %s76, %s77
      %p89 = scmp.eq.s32.totalorder %s25, 1
      %p90 = por %p88, %p89
      %p92 = scmp.ne.s32.totalorder %s77, %s91
      %p93 = scmp.eq.s32.totalorder %s25, 0
      %p94 = por %p92, %p93
      %s96 = sadd.s32 %s95, 1
      %p99 = scmp.eq.s32.totalorder %s19, 1
      %p100 = scmp.ne.s32.totalorder %s95, %s97
      %p101 = scmp.eq.s32.totalorder %s19, 0
      %p102 = por %p100, %p101
      %p103 = scmp.ne.s32.totalorder %s95, %s97
      %p104 = scmp.eq.s32.totalorder %s24, 1
      %p105 = por %p103, %p104
      %p106 = scmp.ne.s32.totalorder %s97, %s98
      %p107 = scmp.eq.s32.totalorder %s24, 0
      %p108 = por %p106, %p107
      %p109 = scmp.ne.s32.totalorder %s97, %s98
      %p110 = scmp.eq.s32.totalorder %s25, 1
      %p111 = por %p109, %p110
      %p113 = scmp.ne.s32.totalorder %s98, %s112
      %p114 = scmp.eq.s32.totalorder %s25, 0
      %p115 = por %p113, %p114
      %s116 = ssub.s32 %s19, %s26
      %p117 = scmp.eq.s32.totalorder %s116, 0
      %s119 = sadd.s32 %s118, 1
      %s120 = scalar_select %p117, %s118, %s119
      %p123 = pneg %p117
      %p124 = scmp.eq.s32.totalorder %s19, 1
      %p125 = por %p123, %p124
      %p126 = scmp.ne.s32.totalorder %s118, %s121
      %p127 = scmp.eq.s32.totalorder %s19, 0
      %p128 = por %p126, %p127
      %p129 = scmp.ne.s32.totalorder %s118, %s121
      %p130 = scmp.eq.s32.totalorder %s24, 1
      %p131 = por %p129, %p130
      %p132 = scmp.ne.s32.totalorder %s121, %s122
      %p133 = scmp.eq.s32.totalorder %s24, 0
      %p134 = por %p132, %p133
      %p135 = scmp.ne.s32.totalorder %s121, %s122
      %p136 = scmp.eq.s32.totalorder %s25, 1
      %p137 = por %p135, %p136
      %p139 = scmp.ne.s32.totalorder %s122, %s138
      %p140 = scmp.eq.s32.totalorder %s25, 0
      %p141 = por %p139, %p140
      %s142 = ssub.s32 %s19, %s26
      %p143 = scmp.eq.s32.totalorder %s142, 0
      %s145 = sadd.s32 %s144, 1
      %s146 = scalar_select %p143, %s144, %s145
      %p149 = pneg %p143
      %p150 = scmp.eq.s32.totalorder %s19, 1
      %p151 = por %p149, %p150
      %p152 = scmp.ne.s32.totalorder %s144, %s147
      %p153 = scmp.eq.s32.totalorder %s19, 0
      %p154 = por %p152, %p153
      %p155 = scmp.ne.s32.totalorder %s144, %s147
      %p156 = scmp.eq.s32.totalorder %s24, 1
      %p157 = por %p155, %p156
      %p158 = scmp.ne.s32.totalorder %s147, %s148
      %p159 = scmp.eq.s32.totalorder %s24, 0
      %p160 = por %p158, %p159
      %p161 = scmp.ne.s32.totalorder %s147, %s148
      %p162 = scmp.eq.s32.totalorder %s25, 1
      %p163 = por %p161, %p162
      %p165 = scmp.ne.s32.totalorder %s148, %s164
      %p166 = scmp.eq.s32.totalorder %s25, 0
      %p167 = por %p165, %p166
      %p168 = scmp.le.s32.totalorder 1, %s19
      %p169 = scmp.lt.s32.totalorder %s19, 3
      %p170 = pnand %p168, %p169
      %p171 = pneg %p170
      // Predicated region
      $region9: #{tpu_custom_call.1} parent=5 // pred_check
        _
      $region10: #{tpu_custom_call.1} parent=5 // pred_check_branch
        %173 = sbr.rel (%p170) target = $region12
      $region11: #{tpu_custom_call.1} parent=5 // pred_region
        %s174 = ssub.s32 %s19, 1
        // Predicated region
        $region13: #{tpu_custom_call.1} parent=11 // pred_check
          %p175 = pneg %p66
        $region14: #{tpu_custom_call.1} parent=11 // pred_check_branch
          %177 = sbr.rel (%p175) target = $region16
        $region15: #{tpu_custom_call.1} parent=11 // pred_region
          _
        $region16: #{tpu_custom_call.1} parent=11 // pred_fallthru
          _
        // Predicated region
        $region17: #{tpu_custom_call.1} parent=11 // pred_check
          %p178 = pneg %p87
        $region18: #{tpu_custom_call.1} parent=11 // pred_check_branch
          %180 = sbr.rel (%p178) target = $region20
        $region19: #{tpu_custom_call.1} parent=11 // pred_region
          %s182 = ssub.s32 3072, 3072
          %183 = vsyncadd [#allocation3], %s182
          %s184 = sshll.u32 [#allocation2], 4
          %s185 = int_to_ptr.vmem [resolvable:$true] %s184
          %190 = dma.hbm_to_vmem [thread:$0]  %s2, 3072, %s185, [#allocation3], 64, 64, 4
        $region20: #{tpu_custom_call.1} parent=11 // pred_fallthru
          _
        // Predicated region
        $region21: #{tpu_custom_call.1} parent=11 // pred_check
          %p191 = pneg %p108
        $region22: #{tpu_custom_call.1} parent=11 // pred_check_branch
          %193 = sbr.rel (%p191) target = $region24
        $region23: #{tpu_custom_call.1} parent=11 // pred_region
          _
        $region24: #{tpu_custom_call.1} parent=11 // pred_fallthru
          _
      $region12: #{tpu_custom_call.1} parent=5 // pred_fallthru
        _
      %p194 = scmp.lt.s32.totalorder %s19, 2
      // Predicated region
      $region25: #{tpu_custom_call.1} parent=5 // pred_check
        %p195 = pneg %p194
      $region26: #{tpu_custom_call.1} parent=5 // pred_check_branch
        %197 = sbr.rel (%p195) target = $region28
      $region27: #{tpu_custom_call.1} parent=5 // pred_region
        // Predicated region
        $region29: #{tpu_custom_call.1} parent=27 // pred_check
          %p198 = pneg %p39
        $region30: #{tpu_custom_call.1} parent=27 // pred_check_branch
          %200 = sbr.rel (%p198) target = $region32
        $region31: #{tpu_custom_call.1} parent=27 // pred_region
          %s201 = smul.u32 16, %s19
          %p202 = scmp.lt.s32.totalorder %s201, 31
          %s203 = scalar_select %p202, %s201, 31
          %s204 = smul.addr %s203, 4
          %s205 = scalar_lea.vmem %s0, %s204
          %s206 = smul.u32 16, %s19
        $region32: #{tpu_custom_call.1} parent=27 // pred_fallthru
          _
      $region28: #{tpu_custom_call.1} parent=5 // pred_fallthru
        _
      %p207 = scmp.le.s32.totalorder 1, %s19
      %p208 = scmp.lt.s32.totalorder %s19, 3
      %p209 = pnand %p207, %p208
      %p210 = pneg %p209
      // Predicated region
      $region33: #{tpu_custom_call.1} parent=5 // pred_check
        _
      $region34: #{tpu_custom_call.1} parent=5 // pred_check_branch
        %212 = sbr.rel (%p209) target = $region36
      $region35: #{tpu_custom_call.1} parent=5 // pred_region
        %s213 = ssub.s32 %s19, 1
        // Predicated region
        $region37: #{tpu_custom_call.1} parent=35 // pred_check
          %p214 = pneg %p87
        $region38: #{tpu_custom_call.1} parent=35 // pred_check_branch
          %216 = sbr.rel (%p214) target = $region40
        $region39: #{tpu_custom_call.1} parent=35 // pred_region
          %217 = dma.done [#allocation3], 3072
        $region40: #{tpu_custom_call.1} parent=35 // pred_fallthru
          _
        %s218 = smul.u32 16, %s24
        %p219 = scmp.lt.s32.totalorder %s218, 31
        %s220 = scalar_select %p219, %s218, 31
        %s221 = smul.addr %s220, 4
        %s222 = scalar_lea.vmem %s0, %s221
        %p223 = pneg %p45
        %p224 = pneg %p42
        %p225 = pneg %p66
        %p226 = pneg %p63
        %p227 = pneg %p87
        %p228 = pneg %p84
        %p229 = pneg %p108
        %p230 = pneg %p105
        %p231 = pneg %p134
        %p232 = pneg %p131
        %s233 = sand.u32 %s121, 1
        %s234 = scalar_lea.sflag [#allocation4], %s233
        %s235 = sand.u32 %s121, 1
        %s236 = smul.addr %s235, 128
        %s237 = scalar_lea.vmem [#allocation5], %s236
        %p238 = pneg %p160
        %p239 = pneg %p157
        %s240 = sand.u32 %s147, 1
        %s241 = scalar_lea.sflag [#allocation7], %s240
        %s242 = sand.u32 %s147, 1
        %s243 = smul.addr %s242, 128
        %s244 = scalar_lea.vmem [#allocation6], %s243
        %s245 = smul.u32 16, %s24
        %p246 = scmp.lt.s32.totalorder %s245, 31
        %s247 = scalar_select %p246, %s245, 31
        %s248 = smul.addr %s247, 4
        %s249 = scalar_lea.vmem %s0, %s248
        %s250 = smul.u32 16, %s24
        %s251 = smul.u32 16, %s24
        %s252 = smul.u32 16, %s24
        %v254 = vld [vmem:[%s249] sm:$0xf]
        %v255 = vld [vmem:[%s249 + $0x4] sm:$0xf]
        %v256 = vld [vmem:[%s249 + $0x8] sm:$0xf]
        %v257 = vld [vmem:[%s249 + $0xc] sm:$0xf]
        %v258 = vld [vmem:[%s249 + $0x10] sm:$0xf]
        %v259 = vld [vmem:[%s249 + $0x14] sm:$0xf]
        %v260 = vld [vmem:[%s249 + $0x18] sm:$0xf]
        %v261 = vld [vmem:[%s249 + $0x1c] sm:$0xf]
        %v262 = vld [vmem:[%s249 + $0x20] sm:$0xf]
        %v263 = vld [vmem:[%s249 + $0x24] sm:$0xf]
        %v264 = vld [vmem:[%s249 + $0x28] sm:$0xf]
        %v265 = vld [vmem:[%s249 + $0x2c] sm:$0xf]
        %v266 = vld [vmem:[%s249 + $0x30] sm:$0xf]
        %v267 = vld [vmem:[%s249 + $0x34] sm:$0xf]
        %v268 = vld [vmem:[%s249 + $0x38] sm:$0xf]
        %v269 = vld [vmem:[%s249 + $0x3c] sm:$0xf]
        %v270 = vld [vmem:[%s1] sm:$0xf]
        %v271 = vld [vmem:[%s1 + $0x4] sm:$0xf]
        %v272 = vld [vmem:[%s3] sm:$0x1]
        %v274 = vlaneseq
        %v275 = vshrl.u32 %v274, 7
        %v276 = vsub.s32 0, %v275
        %v277 = vrot.slane %v272, %v276
        %v295 = vunpack.c.l.b16 %v254
        %v296 = vunpack.c.l.b16 %v255
        %v297 = vunpack.c.l.b16 %v256
        %v298 = vunpack.c.l.b16 %v257
        %v299 = vunpack.c.l.b16 %v258
        %v300 = vunpack.c.l.b16 %v259
        %v301 = vunpack.c.l.b16 %v260
        %v302 = vunpack.c.l.b16 %v261
        %v303 = vunpack.c.l.b16 %v262
        %v304 = vunpack.c.l.b16 %v263
        %v305 = vunpack.c.l.b16 %v264
        %v306 = vunpack.c.l.b16 %v265
        %v307 = vunpack.c.l.b16 %v266
        %v308 = vunpack.c.l.b16 %v267
        %v309 = vunpack.c.l.b16 %v268
        %v310 = vunpack.c.l.b16 %v269
        %v311 = vpack.c.b16 %v296, %v295
        %v312 = vpack.c.b16 %v298, %v297
        %v313 = vpack.c.b16 %v300, %v299
        %v314 = vpack.c.b16 %v302, %v301
        %v315 = vpack.c.b16 %v304, %v303
        %v316 = vpack.c.b16 %v306, %v305
        %v317 = vpack.c.b16 %v308, %v307
        %v318 = vpack.c.b16 %v310, %v309
        %v321 = vunpack.c.l.b16 %v270
        %v322 = vunpack.c.l.b16 %v271
        %v323 = vpack.c.b16 %v322, %v321
        %vm325 = vcmask 130048
        %v327 = vsel %vm325, %v311, 0
        %v330 = vsel %vm325, %v312, 0
        %v333 = vsel %vm325, %v313, 0
        %v336 = vsel %vm325, %v314, 0
        %v339 = vsel %vm325, %v315, 0
        %v342 = vsel %vm325, %v316, 0
        %v345 = vsel %vm325, %v317, 0
        %v348 = vsel %vm325, %v318, 0
        %350 = vmatprep.subr.bf16.mxu0 0
        %351 = vmatpush1.bf16.msra.mxu0 0
        %352 = vmatprep.subr.bf16.mxu0 0
        %353 = vmatpush1.bf16.msra.mxu0 0
        %354 = vmatprep.subr.bf16.mxu0 0
        %355 = vmatpush1.bf16.msra.mxu0 0
        %356 = vmatprep.subr.bf16.mxu0 0
        %357 = vmatpush1.bf16.msra.mxu0 0
        %358 = vmatprep.subr.bf16.mxu0 0
        %359 = vmatpush1.bf16.msra.mxu0 0
        %360 = vmatprep.subr.bf16.mxu0 0
        %361 = vmatpush1.bf16.msra.mxu0 0
        %362 = vmatprep.subr.bf16.mxu0 0
        %363 = vmatpush1.bf16.msra.mxu0 0
        %364 = vmatprep.subr.bf16.mxu0 0
        %365 = vmatpush1.bf16.msra.mxu0 %v323
        %366 = vmatprep.subr.bf16.mxu0 0
        %367 = vmatpush2.bf16.msra.mxu0 0
        %368 = vmatprep.subr.bf16.mxu0 0
        %369 = vmatpush2.bf16.msra.mxu0 0
        %370 = vmatprep.subr.bf16.mxu0 0
        %371 = vmatpush2.bf16.msra.mxu0 0
        %372 = vmatprep.subr.bf16.mxu0 0
        %373 = vmatpush2.bf16.msra.mxu0 0
        %374 = vmatprep.subr.bf16.mxu0 0
        %375 = vmatpush2.bf16.msra.mxu0 0
        %376 = vmatprep.subr.bf16.mxu0 0
        %377 = vmatpush2.bf16.msra.mxu0 0
        %378 = vmatprep.subr.bf16.mxu0 0
        %379 = vmatpush2.bf16.msra.mxu0 0
        %380 = vmatprep.subr.bf16.mxu0 0
        %381 = vmatpush2.bf16.msra.mxu0 0
        %382 = vmatprep.mubr.bf16.mxu0 0
        %383 = vmatmul.mubr.bf16.gmra.mxu0 %v327
        %v384 = vpop.f32.mrf.mxu0
        %v385 = vadd.f32 %v277, %v384
        %v386 = vpop.f32.mrf.mxu0
        %v387 = vpop.f32.mrf.mxu0
        %v388 = vadd.f32 %v277, %v387
        %v389 = vpop.f32.mrf.mxu0
        %390 = vmatprep.mubr.bf16.mxu0 0
        %391 = vmatmul.mubr.bf16.gmra.mxu0 %v330
        %v392 = vpop.f32.mrf.mxu0
        %v393 = vadd.f32 %v277, %v392
        %v394 = vpop.f32.mrf.mxu0
        %v395 = vpop.f32.mrf.mxu0
        %v396 = vadd.f32 %v277, %v395
        %v397 = vpop.f32.mrf.mxu0
        %398 = vmatprep.mubr.bf16.mxu0 0
        %399 = vmatmul.mubr.bf16.gmra.mxu0 %v333
        %v400 = vpop.f32.mrf.mxu0
        %v401 = vadd.f32 %v277, %v400
        %v402 = vpop.f32.mrf.mxu0
        %v403 = vpop.f32.mrf.mxu0
        %v404 = vadd.f32 %v277, %v403
        %v405 = vpop.f32.mrf.mxu0
        %406 = vmatprep.mubr.bf16.mxu0 0
        %407 = vmatmul.mubr.bf16.gmra.mxu0 %v336
        %v408 = vpop.f32.mrf.mxu0
        %v409 = vadd.f32 %v277, %v408
        %v410 = vpop.f32.mrf.mxu0
        %v411 = vpop.f32.mrf.mxu0
        %v412 = vadd.f32 %v277, %v411
        %v413 = vpop.f32.mrf.mxu0
        %414 = vmatprep.mubr.bf16.mxu0 0
        %415 = vmatmul.mubr.bf16.gmra.mxu0 %v339
        %v416 = vpop.f32.mrf.mxu0
        %v417 = vadd.f32 %v277, %v416
        %v418 = vpop.f32.mrf.mxu0
        %v419 = vpop.f32.mrf.mxu0
        %v420 = vadd.f32 %v277, %v419
        %v421 = vpop.f32.mrf.mxu0
        %422 = vmatprep.mubr.bf16.mxu0 0
        %423 = vmatmul.mubr.bf16.gmra.mxu0 %v342
        %v424 = vpop.f32.mrf.mxu0
        %v425 = vadd.f32 %v277, %v424
        %v426 = vpop.f32.mrf.mxu0
        %v427 = vpop.f32.mrf.mxu0
        %v428 = vadd.f32 %v277, %v427
        %v429 = vpop.f32.mrf.mxu0
        %430 = vmatprep.mubr.bf16.mxu0 0
        %431 = vmatmul.mubr.bf16.gmra.mxu0 %v345
        %v432 = vpop.f32.mrf.mxu0
        %v433 = vadd.f32 %v277, %v432
        %v434 = vpop.f32.mrf.mxu0
        %v435 = vpop.f32.mrf.mxu0
        %v436 = vadd.f32 %v277, %v435
        %v437 = vpop.f32.mrf.mxu0
        %438 = vmatprep.mubr.bf16.mxu0 0
        %439 = vmatmul.mubr.bf16.gmra.mxu0 %v348
        %v440 = vpop.f32.mrf.mxu0
        %v441 = vadd.f32 %v277, %v440
        %v442 = vpop.f32.mrf.mxu0
        %v443 = vpop.f32.mrf.mxu0
        %v444 = vadd.f32 %v277, %v443
        %v445 = vpop.f32.mrf.mxu0
        %446 = vdwg.mxu0
        %v447 = vmax.f32 %v385, 0.0
        %v448 = vmax.f32 %v388, 0.0
        %v449 = vmax.f32 %v393, 0.0
        %v450 = vmax.f32 %v396, 0.0
        %v451 = vmax.f32 %v401, 0.0
        %v452 = vmax.f32 %v404, 0.0
        %v453 = vmax.f32 %v409, 0.0
        %v454 = vmax.f32 %v412, 0.0
        %v455 = vmax.f32 %v417, 0.0
        %v456 = vmax.f32 %v420, 0.0
        %v457 = vmax.f32 %v425, 0.0
        %v458 = vmax.f32 %v428, 0.0
        %v459 = vmax.f32 %v433, 0.0
        %v460 = vmax.f32 %v436, 0.0
        %v461 = vmax.f32 %v441, 0.0
        %v462 = vmax.f32 %v444, 0.0
        %v463 = vpack.c.bf16 %v448, %v447
        %v464 = vpack.c.bf16 %v450, %v449
        %v465 = vpack.c.bf16 %v452, %v451
        %v466 = vpack.c.bf16 %v454, %v453
        %v467 = vpack.c.bf16 %v456, %v455
        %v468 = vpack.c.bf16 %v458, %v457
        %v469 = vpack.c.bf16 %v460, %v459
        %v470 = vpack.c.bf16 %v462, %v461
        %v471 = vld [vmem:[#allocation2] sm:$0xf]
        %v472 = vld [vmem:[#allocation2 + $0x4] sm:$0xf]
        %v473 = vld [vmem:[#allocation2 + $0x8] sm:$0xf]
        %v474 = vld [vmem:[#allocation2 + $0xc] sm:$0xf]
        %v475 = vld [vmem:[#allocation2 + $0x10] sm:$0xf]
        %v476 = vld [vmem:[#allocation2 + $0x14] sm:$0xf]
        %v477 = vld [vmem:[#allocation2 + $0x18] sm:$0xf]
        %v478 = vld [vmem:[#allocation2 + $0x1c] sm:$0xf]
        %v479 = vld [vmem:[#allocation2 + $0x20] sm:$0xf]
        %v480 = vld [vmem:[#allocation2 + $0x24] sm:$0xf]
        %v481 = vld [vmem:[#allocation2 + $0x28] sm:$0xf]
        %v482 = vld [vmem:[#allocation2 + $0x2c] sm:$0xf]
        %v483 = vld [vmem:[#allocation2 + $0x30] sm:$0xf]
        %v484 = vld [vmem:[#allocation2 + $0x34] sm:$0xf]
        %v485 = vld [vmem:[#allocation2 + $0x38] sm:$0xf]
        %v486 = vld [vmem:[#allocation2 + $0x3c] sm:$0xf]
        %s487 = scalar_lea.vmem %s3, 1
        %v488 = vld [vmem:[%s487] sm:$0x1]
        %v490 = vlaneseq
        %v491 = vshrl.u32 %v490, 7
        %v492 = vsub.s32 0, %v491
        %v493 = vrot.slane %v488, %v492
        %v511 = vunpack.c.l.b16 %v471
        %v512 = vunpack.c.l.b16 %v472
        %v513 = vunpack.c.l.b16 %v473
        %v514 = vunpack.c.l.b16 %v474
        %v515 = vunpack.c.l.b16 %v475
        %v516 = vunpack.c.l.b16 %v476
        %v517 = vunpack.c.l.b16 %v477
        %v518 = vunpack.c.l.b16 %v478
        %v519 = vunpack.c.l.b16 %v479
        %v520 = vunpack.c.l.b16 %v480
        %v521 = vunpack.c.l.b16 %v481
        %v522 = vunpack.c.l.b16 %v482
        %v523 = vunpack.c.l.b16 %v483
        %v524 = vunpack.c.l.b16 %v484
        %v525 = vunpack.c.l.b16 %v485
        %v526 = vunpack.c.l.b16 %v486
        %v527 = vpack.c.b16 %v512, %v511
        %v528 = vpack.c.b16 %v514, %v513
        %v529 = vpack.c.b16 %v516, %v515
        %v530 = vpack.c.b16 %v518, %v517
        %v531 = vpack.c.b16 %v520, %v519
        %v532 = vpack.c.b16 %v522, %v521
        %v533 = vpack.c.b16 %v524, %v523
        %v534 = vpack.c.b16 %v526, %v525
        %543 = vmatprep.subr.bf16.mxu0 0
        %544 = vmatpush1.bf16.msra.mxu0 %v534
        %545 = vmatprep.subr.bf16.mxu0 0
        %546 = vmatpush1.bf16.msra.mxu0 %v533
        %547 = vmatprep.subr.bf16.mxu0 0
        %548 = vmatpush1.bf16.msra.mxu0 %v532
        %549 = vmatprep.subr.bf16.mxu0 0
        %550 = vmatpush1.bf16.msra.mxu0 %v531
        %551 = vmatprep.subr.bf16.mxu0 0
        %552 = vmatpush1.bf16.msra.mxu0 %v530
        %553 = vmatprep.subr.bf16.mxu0 0
        %554 = vmatpush1.bf16.msra.mxu0 %v529
        %555 = vmatprep.subr.bf16.mxu0 0
        %556 = vmatpush1.bf16.msra.mxu0 %v528
        %557 = vmatprep.subr.bf16.mxu0 0
        %558 = vmatpush1.bf16.msra.mxu0 %v527
        %559 = vmatprep.subr.bf16.mxu0 0
        %560 = vmatpush2.bf16.msra.mxu0 0
        %561 = vmatprep.subr.bf16.mxu0 0
        %562 = vmatpush2.bf16.msra.mxu0 0
        %563 = vmatprep.subr.bf16.mxu0 0
        %564 = vmatpush2.bf16.msra.mxu0 0
        %565 = vmatprep.subr.bf16.mxu0 0
        %566 = vmatpush2.bf16.msra.mxu0 0
        %567 = vmatprep.subr.bf16.mxu0 0
        %568 = vmatpush2.bf16.msra.mxu0 0
        %569 = vmatprep.subr.bf16.mxu0 0
        %570 = vmatpush2.bf16.msra.mxu0 0
        %571 = vmatprep.subr.bf16.mxu0 0
        %572 = vmatpush2.bf16.msra.mxu0 0
        %573 = vmatprep.subr.bf16.mxu0 0
        %574 = vmatpush2.bf16.msra.mxu0 0
        %575 = vmatprep.mubr.bf16.mxu0 0
        %576 = vmatmul.mubr.bf16.gmra.mxu0 %v463
        %v577 = vpop.f32.mrf.mxu0
        %v578 = vadd.f32 %v493, %v577
        %v579 = vpop.f32.mrf.mxu0
        %v580 = vpop.f32.mrf.mxu0
        %v581 = vadd.f32 %v493, %v580
        %v582 = vpop.f32.mrf.mxu0
        %583 = vmatprep.mubr.bf16.mxu0 0
        %584 = vmatmul.mubr.bf16.gmra.mxu0 %v464
        %v585 = vpop.f32.mrf.mxu0
        %v586 = vadd.f32 %v493, %v585
        %v587 = vpop.f32.mrf.mxu0
        %v588 = vpop.f32.mrf.mxu0
        %v589 = vadd.f32 %v493, %v588
        %v590 = vpop.f32.mrf.mxu0
        %591 = vmatprep.mubr.bf16.mxu0 0
        %592 = vmatmul.mubr.bf16.gmra.mxu0 %v465
        %v593 = vpop.f32.mrf.mxu0
        %v594 = vadd.f32 %v493, %v593
        %v595 = vpop.f32.mrf.mxu0
        %v596 = vpop.f32.mrf.mxu0
        %v597 = vadd.f32 %v493, %v596
        %v598 = vpop.f32.mrf.mxu0
        %599 = vmatprep.mubr.bf16.mxu0 0
        %600 = vmatmul.mubr.bf16.gmra.mxu0 %v466
        %v601 = vpop.f32.mrf.mxu0
        %v602 = vadd.f32 %v493, %v601
        %v603 = vpop.f32.mrf.mxu0
        %v604 = vpop.f32.mrf.mxu0
        %v605 = vadd.f32 %v493, %v604
        %v606 = vpop.f32.mrf.mxu0
        %607 = vmatprep.mubr.bf16.mxu0 0
        %608 = vmatmul.mubr.bf16.gmra.mxu0 %v467
        %v609 = vpop.f32.mrf.mxu0
        %v610 = vadd.f32 %v493, %v609
        %v611 = vpop.f32.mrf.mxu0
        %v612 = vpop.f32.mrf.mxu0
        %v613 = vadd.f32 %v493, %v612
        %v614 = vpop.f32.mrf.mxu0
        %615 = vmatprep.mubr.bf16.mxu0 0
        %616 = vmatmul.mubr.bf16.gmra.mxu0 %v468
        %v617 = vpop.f32.mrf.mxu0
        %v618 = vadd.f32 %v493, %v617
        %v619 = vpop.f32.mrf.mxu0
        %v620 = vpop.f32.mrf.mxu0
        %v621 = vadd.f32 %v493, %v620
        %v622 = vpop.f32.mrf.mxu0
        %623 = vmatprep.mubr.bf16.mxu0 0
        %624 = vmatmul.mubr.bf16.gmra.mxu0 %v469
        %v625 = vpop.f32.mrf.mxu0
        %v626 = vadd.f32 %v493, %v625
        %v627 = vpop.f32.mrf.mxu0
        %v628 = vpop.f32.mrf.mxu0
        %v629 = vadd.f32 %v493, %v628
        %v630 = vpop.f32.mrf.mxu0
        %631 = vmatprep.mubr.bf16.mxu0 0
        %632 = vmatmul.mubr.bf16.gmra.mxu0 %v470
        %v633 = vpop.f32.mrf.mxu0
        %v634 = vadd.f32 %v493, %v633
        %v635 = vpop.f32.mrf.mxu0
        %v636 = vpop.f32.mrf.mxu0
        %v637 = vadd.f32 %v493, %v636
        %v638 = vpop.f32.mrf.mxu0
        %639 = vdwg.mxu0
        %v640 = vmax.f32 %v578, 0.0
        %v641 = vmax.f32 %v581, 0.0
        %v642 = vmax.f32 %v586, 0.0
        %v643 = vmax.f32 %v589, 0.0
        %v644 = vmax.f32 %v594, 0.0
        %v645 = vmax.f32 %v597, 0.0
        %v646 = vmax.f32 %v602, 0.0
        %v647 = vmax.f32 %v605, 0.0
        %v648 = vmax.f32 %v610, 0.0
        %v649 = vmax.f32 %v613, 0.0
        %v650 = vmax.f32 %v618, 0.0
        %v651 = vmax.f32 %v621, 0.0
        %v652 = vmax.f32 %v626, 0.0
        %v653 = vmax.f32 %v629, 0.0
        %v654 = vmax.f32 %v634, 0.0
        %v655 = vmax.f32 %v637, 0.0
        %v656 = vpack.c.bf16 %v641, %v640
        %v657 = vpack.c.bf16 %v643, %v642
        %v658 = vpack.c.bf16 %v645, %v644
        %v659 = vpack.c.bf16 %v647, %v646
        %v660 = vpack.c.bf16 %v649, %v648
        %v661 = vpack.c.bf16 %v651, %v650
        %v662 = vpack.c.bf16 %v653, %v652
        %v663 = vpack.c.bf16 %v655, %v654
        %s664 = scalar_lea.vmem [#allocation2], 64
        %v665 = vld [vmem:[%s664] sm:$0xf]
        %v666 = vld [vmem:[%s664 + $0x4] sm:$0xf]
        %v667 = vld [vmem:[%s664 + $0x8] sm:$0xf]
        %v668 = vld [vmem:[%s664 + $0xc] sm:$0xf]
        %v669 = vld [vmem:[%s664 + $0x10] sm:$0xf]
        %v670 = vld [vmem:[%s664 + $0x14] sm:$0xf]
        %v671 = vld [vmem:[%s664 + $0x18] sm:$0xf]
        %v672 = vld [vmem:[%s664 + $0x1c] sm:$0xf]
        %v673 = vld [vmem:[%s664 + $0x20] sm:$0xf]
        %v674 = vld [vmem:[%s664 + $0x24] sm:$0xf]
        %v675 = vld [vmem:[%s664 + $0x28] sm:$0xf]
        %v676 = vld [vmem:[%s664 + $0x2c] sm:$0xf]
        %v677 = vld [vmem:[%s664 + $0x30] sm:$0xf]
        %v678 = vld [vmem:[%s664 + $0x34] sm:$0xf]
        %v679 = vld [vmem:[%s664 + $0x38] sm:$0xf]
        %v680 = vld [vmem:[%s664 + $0x3c] sm:$0xf]
        %s681 = scalar_lea.vmem %s3, 2
        %v682 = vld [vmem:[%s681] sm:$0x1]
        %v684 = vlaneseq
        %v685 = vshrl.u32 %v684, 7
        %v686 = vsub.s32 0, %v685
        %v687 = vrot.slane %v682, %v686
        %v705 = vunpack.c.l.b16 %v665
        %v706 = vunpack.c.l.b16 %v666
        %v707 = vunpack.c.l.b16 %v667
        %v708 = vunpack.c.l.b16 %v668
        %v709 = vunpack.c.l.b16 %v669
        %v710 = vunpack.c.l.b16 %v670
        %v711 = vunpack.c.l.b16 %v671
        %v712 = vunpack.c.l.b16 %v672
        %v713 = vunpack.c.l.b16 %v673
        %v714 = vunpack.c.l.b16 %v674
        %v715 = vunpack.c.l.b16 %v675
        %v716 = vunpack.c.l.b16 %v676
        %v717 = vunpack.c.l.b16 %v677
        %v718 = vunpack.c.l.b16 %v678
        %v719 = vunpack.c.l.b16 %v679
        %v720 = vunpack.c.l.b16 %v680
        %v721 = vpack.c.b16 %v706, %v705
        %v722 = vpack.c.b16 %v708, %v707
        %v723 = vpack.c.b16 %v710, %v709
        %v724 = vpack.c.b16 %v712, %v711
        %v725 = vpack.c.b16 %v714, %v713
        %v726 = vpack.c.b16 %v716, %v715
        %v727 = vpack.c.b16 %v718, %v717
        %v728 = vpack.c.b16 %v720, %v719
        %737 = vmatprep.subr.bf16.mxu0 0
        %738 = vmatpush1.bf16.msra.mxu0 %v728
        %739 = vmatprep.subr.bf16.mxu0 0
        %740 = vmatpush1.bf16.msra.mxu0 %v727
        %741 = vmatprep.subr.bf16.mxu0 0
        %742 = vmatpush1.bf16.msra.mxu0 %v726
        %743 = vmatprep.subr.bf16.mxu0 0
        %744 = vmatpush1.bf16.msra.mxu0 %v725
        %745 = vmatprep.subr.bf16.mxu0 0
        %746 = vmatpush1.bf16.msra.mxu0 %v724
        %747 = vmatprep.subr.bf16.mxu0 0
        %748 = vmatpush1.bf16.msra.mxu0 %v723
        %749 = vmatprep.subr.bf16.mxu0 0
        %750 = vmatpush1.bf16.msra.mxu0 %v722
        %751 = vmatprep.subr.bf16.mxu0 0
        %752 = vmatpush1.bf16.msra.mxu0 %v721
        %753 = vmatprep.subr.bf16.mxu0 0
        %754 = vmatpush2.bf16.msra.mxu0 0
        %755 = vmatprep.subr.bf16.mxu0 0
        %756 = vmatpush2.bf16.msra.mxu0 0
        %757 = vmatprep.subr.bf16.mxu0 0
        %758 = vmatpush2.bf16.msra.mxu0 0
        %759 = vmatprep.subr.bf16.mxu0 0
        %760 = vmatpush2.bf16.msra.mxu0 0
        %761 = vmatprep.subr.bf16.mxu0 0
        %762 = vmatpush2.bf16.msra.mxu0 0
        %763 = vmatprep.subr.bf16.mxu0 0
        %764 = vmatpush2.bf16.msra.mxu0 0
        %765 = vmatprep.subr.bf16.mxu0 0
        %766 = vmatpush2.bf16.msra.mxu0 0
        %767 = vmatprep.subr.bf16.mxu0 0
        %768 = vmatpush2.bf16.msra.mxu0 0
        %769 = vmatprep.mubr.bf16.mxu0 0
        %770 = vmatmul.mubr.bf16.gmra.mxu0 %v656
        %v771 = vpop.f32.mrf.mxu0
        %v772 = vadd.f32 %v687, %v771
        %v773 = vpop.f32.mrf.mxu0
        %v774 = vpop.f32.mrf.mxu0
        %v775 = vadd.f32 %v687, %v774
        %v776 = vpop.f32.mrf.mxu0
        %777 = vmatprep.mubr.bf16.mxu0 0
        %778 = vmatmul.mubr.bf16.gmra.mxu0 %v657
        %v779 = vpop.f32.mrf.mxu0
        %v780 = vadd.f32 %v687, %v779
        %v781 = vpop.f32.mrf.mxu0
        %v782 = vpop.f32.mrf.mxu0
        %v783 = vadd.f32 %v687, %v782
        %v784 = vpop.f32.mrf.mxu0
        %785 = vmatprep.mubr.bf16.mxu0 0
        %786 = vmatmul.mubr.bf16.gmra.mxu0 %v658
        %v787 = vpop.f32.mrf.mxu0
        %v788 = vadd.f32 %v687, %v787
        %v789 = vpop.f32.mrf.mxu0
        %v790 = vpop.f32.mrf.mxu0
        %v791 = vadd.f32 %v687, %v790
        %v792 = vpop.f32.mrf.mxu0
        %793 = vmatprep.mubr.bf16.mxu0 0
        %794 = vmatmul.mubr.bf16.gmra.mxu0 %v659
        %v795 = vpop.f32.mrf.mxu0
        %v796 = vadd.f32 %v687, %v795
        %v797 = vpop.f32.mrf.mxu0
        %v798 = vpop.f32.mrf.mxu0
        %v799 = vadd.f32 %v687, %v798
        %v800 = vpop.f32.mrf.mxu0
        %801 = vmatprep.mubr.bf16.mxu0 0
        %802 = vmatmul.mubr.bf16.gmra.mxu0 %v660
        %v803 = vpop.f32.mrf.mxu0
        %v804 = vadd.f32 %v687, %v803
        %v805 = vpop.f32.mrf.mxu0
        %v806 = vpop.f32.mrf.mxu0
        %v807 = vadd.f32 %v687, %v806
        %v808 = vpop.f32.mrf.mxu0
        %809 = vmatprep.mubr.bf16.mxu0 0
        %810 = vmatmul.mubr.bf16.gmra.mxu0 %v661
        %v811 = vpop.f32.mrf.mxu0
        %v812 = vadd.f32 %v687, %v811
        %v813 = vpop.f32.mrf.mxu0
        %v814 = vpop.f32.mrf.mxu0
        %v815 = vadd.f32 %v687, %v814
        %v816 = vpop.f32.mrf.mxu0
        %817 = vmatprep.mubr.bf16.mxu0 0
        %818 = vmatmul.mubr.bf16.gmra.mxu0 %v662
        %v819 = vpop.f32.mrf.mxu0
        %v820 = vadd.f32 %v687, %v819
        %v821 = vpop.f32.mrf.mxu0
        %v822 = vpop.f32.mrf.mxu0
        %v823 = vadd.f32 %v687, %v822
        %v824 = vpop.f32.mrf.mxu0
        %825 = vmatprep.mubr.bf16.mxu0 0
        %826 = vmatmul.mubr.bf16.gmra.mxu0 %v663
        %v827 = vpop.f32.mrf.mxu0
        %v828 = vadd.f32 %v687, %v827
        %v829 = vpop.f32.mrf.mxu0
        %v830 = vpop.f32.mrf.mxu0
        %v831 = vadd.f32 %v687, %v830
        %v832 = vpop.f32.mrf.mxu0
        %833 = vdwg.mxu0
        %v834 = vmax.f32 %v772, 0.0
        %v835 = vmax.f32 %v775, 0.0
        %v836 = vmax.f32 %v780, 0.0
        %v837 = vmax.f32 %v783, 0.0
        %v838 = vmax.f32 %v788, 0.0
        %v839 = vmax.f32 %v791, 0.0
        %v840 = vmax.f32 %v796, 0.0
        %v841 = vmax.f32 %v799, 0.0
        %v842 = vmax.f32 %v804, 0.0
        %v843 = vmax.f32 %v807, 0.0
        %v844 = vmax.f32 %v812, 0.0
        %v845 = vmax.f32 %v815, 0.0
        %v846 = vmax.f32 %v820, 0.0
        %v847 = vmax.f32 %v823, 0.0
        %v848 = vmax.f32 %v828, 0.0
        %v849 = vmax.f32 %v831, 0.0
        %v850 = vpack.c.bf16 %v835, %v834
        %v851 = vpack.c.bf16 %v837, %v836
        %v852 = vpack.c.bf16 %v839, %v838
        %v853 = vpack.c.bf16 %v841, %v840
        %v854 = vpack.c.bf16 %v843, %v842
        %v855 = vpack.c.bf16 %v845, %v844
        %v856 = vpack.c.bf16 %v847, %v846
        %v857 = vpack.c.bf16 %v849, %v848
        %v866 = vunpack.c.l.b16 %v850
        %v867 = vunpack.c.h.b16 %v850
        %v868 = vunpack.c.l.b16 %v851
        %v869 = vunpack.c.h.b16 %v851
        %v870 = vunpack.c.l.b16 %v852
        %v871 = vunpack.c.h.b16 %v852
        %v872 = vunpack.c.l.b16 %v853
        %v873 = vunpack.c.h.b16 %v853
        %v874 = vunpack.c.l.b16 %v854
        %v875 = vunpack.c.h.b16 %v854
        %v876 = vunpack.c.l.b16 %v855
        %v877 = vunpack.c.h.b16 %v855
        %v878 = vunpack.c.l.b16 %v856
        %v879 = vunpack.c.h.b16 %v856
        %v880 = vunpack.c.l.b16 %v857
        %v881 = vunpack.c.h.b16 %v857
        %v882 = vpack.c.b16 %v866, %v866
        %v883 = vpack.c.b16 %v867, %v867
        %v884 = vpack.c.b16 %v868, %v868
        %v885 = vpack.c.b16 %v869, %v869
        %v886 = vpack.c.b16 %v870, %v870
        %v887 = vpack.c.b16 %v871, %v871
        %v888 = vpack.c.b16 %v872, %v872
        %v889 = vpack.c.b16 %v873, %v873
        %v890 = vpack.c.b16 %v874, %v874
        %v891 = vpack.c.b16 %v875, %v875
        %v892 = vpack.c.b16 %v876, %v876
        %v893 = vpack.c.b16 %v877, %v877
        %v894 = vpack.c.b16 %v878, %v878
        %v895 = vpack.c.b16 %v879, %v879
        %v896 = vpack.c.b16 %v880, %v880
        %v897 = vpack.c.b16 %v881, %v881
        %914 = vst [vmem:[%s237] sm:$0xf] %v882
        %915 = vst [vmem:[%s237 + $0x4] sm:$0xf] %v883
        %916 = vst [vmem:[%s237 + $0x8] sm:$0xf] %v884
        %917 = vst [vmem:[%s237 + $0xc] sm:$0xf] %v885
        %918 = vst [vmem:[%s237 + $0x10] sm:$0xf] %v886
        %919 = vst [vmem:[%s237 + $0x14] sm:$0xf] %v887
        %920 = vst [vmem:[%s237 + $0x18] sm:$0xf] %v888
        %921 = vst [vmem:[%s237 + $0x1c] sm:$0xf] %v889
        %922 = vst [vmem:[%s237 + $0x20] sm:$0xf] %v890
        %923 = vst [vmem:[%s237 + $0x24] sm:$0xf] %v891
        %924 = vst [vmem:[%s237 + $0x28] sm:$0xf] %v892
        %925 = vst [vmem:[%s237 + $0x2c] sm:$0xf] %v893
        %926 = vst [vmem:[%s237 + $0x30] sm:$0xf] %v894
        %927 = vst [vmem:[%s237 + $0x34] sm:$0xf] %v895
        %928 = vst [vmem:[%s237 + $0x38] sm:$0xf] %v896
        %929 = vst [vmem:[%s237 + $0x3c] sm:$0xf] %v897
        %s930 = scalar_lea.vmem [#allocation2], 128
        %v931 = vld [vmem:[%s930] sm:$0xf]
        %v932 = vld [vmem:[%s930 + $0x4] sm:$0xf]
        %v933 = vld [vmem:[%s930 + $0x8] sm:$0xf]
        %v934 = vld [vmem:[%s930 + $0xc] sm:$0xf]
        %v935 = vld [vmem:[%s930 + $0x10] sm:$0xf]
        %v936 = vld [vmem:[%s930 + $0x14] sm:$0xf]
        %v937 = vld [vmem:[%s930 + $0x18] sm:$0xf]
        %v938 = vld [vmem:[%s930 + $0x1c] sm:$0xf]
        %v939 = vld [vmem:[%s930 + $0x20] sm:$0xf]
        %v940 = vld [vmem:[%s930 + $0x24] sm:$0xf]
        %v941 = vld [vmem:[%s930 + $0x28] sm:$0xf]
        %v942 = vld [vmem:[%s930 + $0x2c] sm:$0xf]
        %v943 = vld [vmem:[%s930 + $0x30] sm:$0xf]
        %v944 = vld [vmem:[%s930 + $0x34] sm:$0xf]
        %v945 = vld [vmem:[%s930 + $0x38] sm:$0xf]
        %v946 = vld [vmem:[%s930 + $0x3c] sm:$0xf]
        %s947 = scalar_lea.vmem %s3, 3
        %v948 = vld [vmem:[%s947] sm:$0x1]
        %v950 = vlaneseq
        %v951 = vshrl.u32 %v950, 7
        %v952 = vsub.s32 0, %v951
        %v953 = vrot.slane %v948, %v952
        %v971 = vunpack.c.l.b16 %v931
        %v972 = vunpack.c.l.b16 %v932
        %v973 = vunpack.c.l.b16 %v933
        %v974 = vunpack.c.l.b16 %v934
        %v975 = vunpack.c.l.b16 %v935
        %v976 = vunpack.c.l.b16 %v936
        %v977 = vunpack.c.l.b16 %v937
        %v978 = vunpack.c.l.b16 %v938
        %v979 = vunpack.c.l.b16 %v939
        %v980 = vunpack.c.l.b16 %v940
        %v981 = vunpack.c.l.b16 %v941
        %v982 = vunpack.c.l.b16 %v942
        %v983 = vunpack.c.l.b16 %v943
        %v984 = vunpack.c.l.b16 %v944
        %v985 = vunpack.c.l.b16 %v945
        %v986 = vunpack.c.l.b16 %v946
        %v987 = vpack.c.b16 %v972, %v971
        %v988 = vpack.c.b16 %v974, %v973
        %v989 = vpack.c.b16 %v976, %v975
        %v990 = vpack.c.b16 %v978, %v977
        %v991 = vpack.c.b16 %v980, %v979
        %v992 = vpack.c.b16 %v982, %v981
        %v993 = vpack.c.b16 %v984, %v983
        %v994 = vpack.c.b16 %v986, %v985
        %1003 = vmatprep.subr.bf16.mxu0 0
        %1004 = vmatpush1.bf16.msra.mxu0 %v994
        %1005 = vmatprep.subr.bf16.mxu0 0
        %1006 = vmatpush1.bf16.msra.mxu0 %v993
        %1007 = vmatprep.subr.bf16.mxu0 0
        %1008 = vmatpush1.bf16.msra.mxu0 %v992
        %1009 = vmatprep.subr.bf16.mxu0 0
        %1010 = vmatpush1.bf16.msra.mxu0 %v991
        %1011 = vmatprep.subr.bf16.mxu0 0
        %1012 = vmatpush1.bf16.msra.mxu0 %v990
        %1013 = vmatprep.subr.bf16.mxu0 0
        %1014 = vmatpush1.bf16.msra.mxu0 %v989
        %1015 = vmatprep.subr.bf16.mxu0 0
        %1016 = vmatpush1.bf16.msra.mxu0 %v988
        %1017 = vmatprep.subr.bf16.mxu0 0
        %1018 = vmatpush1.bf16.msra.mxu0 %v987
        %1019 = vmatprep.subr.bf16.mxu0 0
        %1020 = vmatpush2.bf16.msra.mxu0 0
        %1021 = vmatprep.subr.bf16.mxu0 0
        %1022 = vmatpush2.bf16.msra.mxu0 0
        %1023 = vmatprep.subr.bf16.mxu0 0
        %1024 = vmatpush2.bf16.msra.mxu0 0
        %1025 = vmatprep.subr.bf16.mxu0 0
        %1026 = vmatpush2.bf16.msra.mxu0 0
        %1027 = vmatprep.subr.bf16.mxu0 0
        %1028 = vmatpush2.bf16.msra.mxu0 0
        %1029 = vmatprep.subr.bf16.mxu0 0
        %1030 = vmatpush2.bf16.msra.mxu0 0
        %1031 = vmatprep.subr.bf16.mxu0 0
        %1032 = vmatpush2.bf16.msra.mxu0 0
        %1033 = vmatprep.subr.bf16.mxu0 0
        %1034 = vmatpush2.bf16.msra.mxu0 0
        %1035 = vmatprep.mubr.bf16.mxu0 0
        %1036 = vmatmul.mubr.bf16.gmra.mxu0 %v850
        %v1037 = vpop.f32.mrf.mxu0
        %v1038 = vadd.f32 %v953, %v1037
        %v1039 = vpop.f32.mrf.mxu0
        %v1040 = vpop.f32.mrf.mxu0
        %v1041 = vadd.f32 %v953, %v1040
        %v1042 = vpop.f32.mrf.mxu0
        %1043 = vmatprep.mubr.bf16.mxu0 0
        %1044 = vmatmul.mubr.bf16.gmra.mxu0 %v851
        %v1045 = vpop.f32.mrf.mxu0
        %v1046 = vadd.f32 %v953, %v1045
        %v1047 = vpop.f32.mrf.mxu0
        %v1048 = vpop.f32.mrf.mxu0
        %v1049 = vadd.f32 %v953, %v1048
        %v1050 = vpop.f32.mrf.mxu0
        %1051 = vmatprep.mubr.bf16.mxu0 0
        %1052 = vmatmul.mubr.bf16.gmra.mxu0 %v852
        %v1053 = vpop.f32.mrf.mxu0
        %v1054 = vadd.f32 %v953, %v1053
        %v1055 = vpop.f32.mrf.mxu0
        %v1056 = vpop.f32.mrf.mxu0
        %v1057 = vadd.f32 %v953, %v1056
        %v1058 = vpop.f32.mrf.mxu0
        %1059 = vmatprep.mubr.bf16.mxu0 0
        %1060 = vmatmul.mubr.bf16.gmra.mxu0 %v853
        %v1061 = vpop.f32.mrf.mxu0
        %v1062 = vadd.f32 %v953, %v1061
        %v1063 = vpop.f32.mrf.mxu0
        %v1064 = vpop.f32.mrf.mxu0
        %v1065 = vadd.f32 %v953, %v1064
        %v1066 = vpop.f32.mrf.mxu0
        %1067 = vmatprep.mubr.bf16.mxu0 0
        %1068 = vmatmul.mubr.bf16.gmra.mxu0 %v854
        %v1069 = vpop.f32.mrf.mxu0
        %v1070 = vadd.f32 %v953, %v1069
        %v1071 = vpop.f32.mrf.mxu0
        %v1072 = vpop.f32.mrf.mxu0
        %v1073 = vadd.f32 %v953, %v1072
        %v1074 = vpop.f32.mrf.mxu0
        %1075 = vmatprep.mubr.bf16.mxu0 0
        %1076 = vmatmul.mubr.bf16.gmra.mxu0 %v855
        %v1077 = vpop.f32.mrf.mxu0
        %v1078 = vadd.f32 %v953, %v1077
        %v1079 = vpop.f32.mrf.mxu0
        %v1080 = vpop.f32.mrf.mxu0
        %v1081 = vadd.f32 %v953, %v1080
        %v1082 = vpop.f32.mrf.mxu0
        %1083 = vmatprep.mubr.bf16.mxu0 0
        %1084 = vmatmul.mubr.bf16.gmra.mxu0 %v856
        %v1085 = vpop.f32.mrf.mxu0
        %v1086 = vadd.f32 %v953, %v1085
        %v1087 = vpop.f32.mrf.mxu0
        %v1088 = vpop.f32.mrf.mxu0
        %v1089 = vadd.f32 %v953, %v1088
        %v1090 = vpop.f32.mrf.mxu0
        %1091 = vmatprep.mubr.bf16.mxu0 0
        %1092 = vmatmul.mubr.bf16.gmra.mxu0 %v857
        %v1093 = vpop.f32.mrf.mxu0
        %v1094 = vadd.f32 %v953, %v1093
        %v1095 = vpop.f32.mrf.mxu0
        %v1096 = vpop.f32.mrf.mxu0
        %v1097 = vadd.f32 %v953, %v1096
        %v1098 = vpop.f32.mrf.mxu0
        %1099 = vdwg.mxu0
        %v1100 = vpack.c.bf16 %v1041, %v1038
        %v1101 = vpack.c.bf16 %v1049, %v1046
        %v1102 = vpack.c.bf16 %v1057, %v1054
        %v1103 = vpack.c.bf16 %v1065, %v1062
        %v1104 = vpack.c.bf16 %v1073, %v1070
        %v1105 = vpack.c.bf16 %v1081, %v1078
        %v1106 = vpack.c.bf16 %v1089, %v1086
        %v1107 = vpack.c.bf16 %v1097, %v1094
        %v1116 = vunpack.c.l.b16 %v1100
        %v1117 = vunpack.c.h.b16 %v1100
        %v1118 = vunpack.c.l.b16 %v1101
        %v1119 = vunpack.c.h.b16 %v1101
        %v1120 = vunpack.c.l.b16 %v1102
        %v1121 = vunpack.c.h.b16 %v1102
        %v1122 = vunpack.c.l.b16 %v1103
        %v1123 = vunpack.c.h.b16 %v1103
        %v1124 = vunpack.c.l.b16 %v1104
        %v1125 = vunpack.c.h.b16 %v1104
        %v1126 = vunpack.c.l.b16 %v1105
        %v1127 = vunpack.c.h.b16 %v1105
        %v1128 = vunpack.c.l.b16 %v1106
        %v1129 = vunpack.c.h.b16 %v1106
        %v1130 = vunpack.c.l.b16 %v1107
        %v1131 = vunpack.c.h.b16 %v1107
        %v1132 = vpack.c.b16 %v1116, %v1116
        %v1133 = vpack.c.b16 %v1117, %v1117
        %v1134 = vpack.c.b16 %v1118, %v1118
        %v1135 = vpack.c.b16 %v1119, %v1119
        %v1136 = vpack.c.b16 %v1120, %v1120
        %v1137 = vpack.c.b16 %v1121, %v1121
        %v1138 = vpack.c.b16 %v1122, %v1122
        %v1139 = vpack.c.b16 %v1123, %v1123
        %v1140 = vpack.c.b16 %v1124, %v1124
        %v1141 = vpack.c.b16 %v1125, %v1125
        %v1142 = vpack.c.b16 %v1126, %v1126
        %v1143 = vpack.c.b16 %v1127, %v1127
        %v1144 = vpack.c.b16 %v1128, %v1128
        %v1145 = vpack.c.b16 %v1129, %v1129
        %v1146 = vpack.c.b16 %v1130, %v1130
        %v1147 = vpack.c.b16 %v1131, %v1131
        %s1164 = scalar_lea.vmem %s237, 64 [#allocation5]
        %1165 = vst [vmem:[%s1164] sm:$0xf] %v1132
        %1166 = vst [vmem:[%s1164 + $0x4] sm:$0xf] %v1133
        %1167 = vst [vmem:[%s1164 + $0x8] sm:$0xf] %v1134
        %1168 = vst [vmem:[%s1164 + $0xc] sm:$0xf] %v1135
        %1169 = vst [vmem:[%s1164 + $0x10] sm:$0xf] %v1136
        %1170 = vst [vmem:[%s1164 + $0x14] sm:$0xf] %v1137
        %1171 = vst [vmem:[%s1164 + $0x18] sm:$0xf] %v1138
        %1172 = vst [vmem:[%s1164 + $0x1c] sm:$0xf] %v1139
        %1173 = vst [vmem:[%s1164 + $0x20] sm:$0xf] %v1140
        %1174 = vst [vmem:[%s1164 + $0x24] sm:$0xf] %v1141
        %1175 = vst [vmem:[%s1164 + $0x28] sm:$0xf] %v1142
        %1176 = vst [vmem:[%s1164 + $0x2c] sm:$0xf] %v1143
        %1177 = vst [vmem:[%s1164 + $0x30] sm:$0xf] %v1144
        %1178 = vst [vmem:[%s1164 + $0x34] sm:$0xf] %v1145
        %1179 = vst [vmem:[%s1164 + $0x38] sm:$0xf] %v1146
        %1180 = vst [vmem:[%s1164 + $0x3c] sm:$0xf] %v1147
        %1181 = vmax.xlane.f32.xlu0 %v1038
        %v1182 = vpop.xlane.xlu0 %1181
        %1183 = vmax.xlane.f32.xlu0 %v1041
        %v1184 = vpop.xlane.xlu0 %1183
        %1185 = vmax.xlane.f32.xlu0 %v1046
        %v1186 = vpop.xlane.xlu0 %1185
        %1187 = vmax.xlane.f32.xlu0 %v1049
        %v1188 = vpop.xlane.xlu0 %1187
        %1189 = vmax.xlane.f32.xlu0 %v1054
        %v1190 = vpop.xlane.xlu0 %1189
        %1191 = vmax.xlane.f32.xlu0 %v1057
        %v1192 = vpop.xlane.xlu0 %1191
        %1193 = vmax.xlane.f32.xlu0 %v1062
        %v1194 = vpop.xlane.xlu0 %1193
        %1195 = vmax.xlane.f32.xlu0 %v1065
        %v1196 = vpop.xlane.xlu0 %1195
        %1197 = vmax.xlane.f32.xlu0 %v1070
        %v1198 = vpop.xlane.xlu0 %1197
        %1199 = vmax.xlane.f32.xlu0 %v1073
        %v1200 = vpop.xlane.xlu0 %1199
        %1201 = vmax.xlane.f32.xlu0 %v1078
        %v1202 = vpop.xlane.xlu0 %1201
        %1203 = vmax.xlane.f32.xlu0 %v1081
        %v1204 = vpop.xlane.xlu0 %1203
        %1205 = vmax.xlane.f32.xlu0 %v1086
        %v1206 = vpop.xlane.xlu0 %1205
        %1207 = vmax.xlane.f32.xlu0 %v1089
        %v1208 = vpop.xlane.xlu0 %1207
        %1209 = vmax.xlane.f32.xlu0 %v1094
        %v1210 = vpop.xlane.xlu0 %1209
        %1211 = vmax.xlane.f32.xlu0 %v1097
        %v1212 = vpop.xlane.xlu0 %1211
        %v1213 = vsub.f32 %v1038, %v1182
        %v1214 = vsub.f32 %v1041, %v1184
        %v1215 = vsub.f32 %v1046, %v1186
        %v1216 = vsub.f32 %v1049, %v1188
        %v1217 = vsub.f32 %v1054, %v1190
        %v1218 = vsub.f32 %v1057, %v1192
        %v1219 = vsub.f32 %v1062, %v1194
        %v1220 = vsub.f32 %v1065, %v1196
        %v1221 = vsub.f32 %v1070, %v1198
        %v1222 = vsub.f32 %v1073, %v1200
        %v1223 = vsub.f32 %v1078, %v1202
        %v1224 = vsub.f32 %v1081, %v1204
        %v1225 = vsub.f32 %v1086, %v1206
        %v1226 = vsub.f32 %v1089, %v1208
        %v1227 = vsub.f32 %v1094, %v1210
        %v1228 = vsub.f32 %v1097, %v1212
        %v1229 = vmul.f32 %v1213, 1.442695
        %v1230 = vpow.pop %v1229
        %v1231 = vmul.f32 %v1214, 1.442695
        %v1232 = vpow.pop %v1231
        %v1233 = vmul.f32 %v1215, 1.442695
        %v1234 = vpow.pop %v1233
        %v1235 = vmul.f32 %v1216, 1.442695
        %v1236 = vpow.pop %v1235
        %v1237 = vmul.f32 %v1217, 1.442695
        %v1238 = vpow.pop %v1237
        %v1239 = vmul.f32 %v1218, 1.442695
        %v1240 = vpow.pop %v1239
        %v1241 = vmul.f32 %v1219, 1.442695
        %v1242 = vpow.pop %v1241
        %v1243 = vmul.f32 %v1220, 1.442695
        %v1244 = vpow.pop %v1243
        %v1245 = vmul.f32 %v1221, 1.442695
        %v1246 = vpow.pop %v1245
        %v1247 = vmul.f32 %v1222, 1.442695
        %v1248 = vpow.pop %v1247
        %v1249 = vmul.f32 %v1223, 1.442695
        %v1250 = vpow.pop %v1249
        %v1251 = vmul.f32 %v1224, 1.442695
        %v1252 = vpow.pop %v1251
        %v1253 = vmul.f32 %v1225, 1.442695
        %v1254 = vpow.pop %v1253
        %v1255 = vmul.f32 %v1226, 1.442695
        %v1256 = vpow.pop %v1255
        %v1257 = vmul.f32 %v1227, 1.442695
        %v1258 = vpow.pop %v1257
        %v1259 = vmul.f32 %v1228, 1.442695
        %v1260 = vpow.pop %v1259
        %1261 = vadd.xlane.f32.xlu0 %v1230
        %v1262 = vpop.xlane.xlu0 %1261
        %1263 = vadd.xlane.f32.xlu0 %v1232
        %v1264 = vpop.xlane.xlu0 %1263
        %1265 = vadd.xlane.f32.xlu0 %v1234
        %v1266 = vpop.xlane.xlu0 %1265
        %1267 = vadd.xlane.f32.xlu0 %v1236
        %v1268 = vpop.xlane.xlu0 %1267
        %1269 = vadd.xlane.f32.xlu0 %v1238
        %v1270 = vpop.xlane.xlu0 %1269
        %1271 = vadd.xlane.f32.xlu0 %v1240
        %v1272 = vpop.xlane.xlu0 %1271
        %1273 = vadd.xlane.f32.xlu0 %v1242
        %v1274 = vpop.xlane.xlu0 %1273
        %1275 = vadd.xlane.f32.xlu0 %v1244
        %v1276 = vpop.xlane.xlu0 %1275
        %1277 = vadd.xlane.f32.xlu0 %v1246
        %v1278 = vpop.xlane.xlu0 %1277
        %1279 = vadd.xlane.f32.xlu0 %v1248
        %v1280 = vpop.xlane.xlu0 %1279
        %1281 = vadd.xlane.f32.xlu0 %v1250
        %v1282 = vpop.xlane.xlu0 %1281
        %1283 = vadd.xlane.f32.xlu0 %v1252
        %v1284 = vpop.xlane.xlu0 %1283
        %1285 = vadd.xlane.f32.xlu0 %v1254
        %v1286 = vpop.xlane.xlu0 %1285
        %1287 = vadd.xlane.f32.xlu0 %v1256
        %v1288 = vpop.xlane.xlu0 %1287
        %1289 = vadd.xlane.f32.xlu0 %v1258
        %v1290 = vpop.xlane.xlu0 %1289
        %1291 = vadd.xlane.f32.xlu0 %v1260
        %v1292 = vpop.xlane.xlu0 %1291
        %v1293 = vrcp.pop %v1262
        %v1294 = vmul.f32 %v1230, %v1293
        %v1295 = vrcp.pop %v1264
        %v1296 = vmul.f32 %v1232, %v1295
        %v1297 = vrcp.pop %v1266
        %v1298 = vmul.f32 %v1234, %v1297
        %v1299 = vrcp.pop %v1268
        %v1300 = vmul.f32 %v1236, %v1299
        %v1301 = vrcp.pop %v1270
        %v1302 = vmul.f32 %v1238, %v1301
        %v1303 = vrcp.pop %v1272
        %v1304 = vmul.f32 %v1240, %v1303
        %v1305 = vrcp.pop %v1274
        %v1306 = vmul.f32 %v1242, %v1305
        %v1307 = vrcp.pop %v1276
        %v1308 = vmul.f32 %v1244, %v1307
        %v1309 = vrcp.pop %v1278
        %v1310 = vmul.f32 %v1246, %v1309
        %v1311 = vrcp.pop %v1280
        %v1312 = vmul.f32 %v1248, %v1311
        %v1313 = vrcp.pop %v1282
        %v1314 = vmul.f32 %v1250, %v1313
        %v1315 = vrcp.pop %v1284
        %v1316 = vmul.f32 %v1252, %v1315
        %v1317 = vrcp.pop %v1286
        %v1318 = vmul.f32 %v1254, %v1317
        %v1319 = vrcp.pop %v1288
        %v1320 = vmul.f32 %v1256, %v1319
        %v1321 = vrcp.pop %v1290
        %v1322 = vmul.f32 %v1258, %v1321
        %v1323 = vrcp.pop %v1292
        %v1324 = vmul.f32 %v1260, %v1323
        %1325 = vst [vmem:[%s244] sm:$0xff] %v1294
        %1326 = vst [vmem:[%s244 + $0x8] sm:$0xff] %v1296
        %1327 = vst [vmem:[%s244 + $0x10] sm:$0xff] %v1298
        %1328 = vst [vmem:[%s244 + $0x18] sm:$0xff] %v1300
        %1329 = vst [vmem:[%s244 + $0x20] sm:$0xff] %v1302
        %1330 = vst [vmem:[%s244 + $0x28] sm:$0xff] %v1304
        %1331 = vst [vmem:[%s244 + $0x30] sm:$0xff] %v1306
        %1332 = vst [vmem:[%s244 + $0x38] sm:$0xff] %v1308
        %1333 = vst [vmem:[%s244 + $0x40] sm:$0xff] %v1310
        %1334 = vst [vmem:[%s244 + $0x48] sm:$0xff] %v1312
        %1335 = vst [vmem:[%s244 + $0x50] sm:$0xff] %v1314
        %1336 = vst [vmem:[%s244 + $0x58] sm:$0xff] %v1316
        %1337 = vst [vmem:[%s244 + $0x60] sm:$0xff] %v1318
        %1338 = vst [vmem:[%s244 + $0x68] sm:$0xff] %v1320
        %1339 = vst [vmem:[%s244 + $0x70] sm:$0xff] %v1322
        %1340 = vst [vmem:[%s244 + $0x78] sm:$0xff] %v1324
        %s1341 = sand.u32 %s121, 1
        %s1342 = scalar_lea.sflag [#allocation4], %s1341
        %s1343 = sand.u32 %s121, 1
        %s1344 = smul.addr %s1343, 128
        %s1345 = scalar_lea.vmem [#allocation5], %s1344
        %s1346 = sand.u32 %s147, 1
        %s1347 = scalar_lea.sflag [#allocation7], %s1346
        %s1348 = sand.u32 %s147, 1
        %s1349 = smul.addr %s1348, 128
        %s1350 = scalar_lea.vmem [#allocation6], %s1349
        // Predicated region
        $region41: #{tpu_custom_call.1} parent=35 // pred_check
          %p1351 = pneg %p131
        $region42: #{tpu_custom_call.1} parent=35 // pred_check_branch
          %1353 = sbr.rel (%p1351) target = $region44
        $region43: #{tpu_custom_call.1} parent=35 // pred_region
          #allocation9 [shape = 'u32[6]{0}', space=smem, size = 0x18, scoped, tag = 'DMA stride descriptor']
          %s1354 = smul.u32 16, %s24
          %s1356 = ssub.s32 2048, 2048
          %1357 = vsyncadd %s1342, %s1356
          %s1358 = smul.addr %s1354, 64
          %s1359 = scalar_lea.hbm %s4, %s1358
          %s1361 = sshll.u32 1, 14
          %s1362 = sxor.u32 4294967295, %s1361
          %s1365 = sshll.u32 7, 18
          %s1366 = sxor.u32 4294967295, %s1365
          %s1367 = sand.u32 0, %s1366
          %s1369 = sor.u32 %s1367, 0
          %s1370 = sshll.u32 %s1345, 4
          %s1371 = int_to_ptr.vmem [resolvable:$true] %s1370
          %1377 = sst [smem:[#allocation9]] 1024
          %s1378 = scalar_lea.smem [#allocation9], 1
          %1379 = sst [smem:[%s1378]] 2048
          %s1380 = scalar_lea.smem [#allocation9], 2
          %1381 = sst [smem:[%s1380]] 16
          %s1382 = scalar_lea.smem [#allocation9], 3
          %1383 = sst [smem:[%s1382]] 64
          %s1384 = scalar_lea.smem [#allocation9], 4
          %1385 = sst [smem:[%s1384]] 64
          %s1386 = scalar_lea.smem [#allocation9], 5
          %1387 = sst [smem:[%s1386]] 4
          %1389 = dma.general %s1371, 2048, %s1359, %s1342, 131072, [#allocation9], %s1369, 0
        $region44: #{tpu_custom_call.1} parent=35 // pred_fallthru
          _
        // Predicated region
        $region45: #{tpu_custom_call.1} parent=35 // pred_check
          %p1390 = pneg %p157
        $region46: #{tpu_custom_call.1} parent=35 // pred_check_branch
          %1392 = sbr.rel (%p1390) target = $region48
        $region47: #{tpu_custom_call.1} parent=35 // pred_region
          %s1393 = smul.u32 16, %s24
          %s1395 = ssub.s32 2048, 2048
          %1396 = vsyncadd %s1347, %s1395
          %s1397 = smul.addr %s1393, 128
          %s1398 = scalar_lea.hbm %s5, %s1397
          %s1399 = sshll.u32 %s1350, 4
          %s1400 = int_to_ptr.vmem [resolvable:$true] %s1399
          %1405 = dma.vmem_to_hbm [thread:$0]  %s1400, 2048, %s1398, %s1347, 128, 128, 8
        $region48: #{tpu_custom_call.1} parent=35 // pred_fallthru
          _
      $region36: #{tpu_custom_call.1} parent=5 // pred_fallthru
        _
      %p1406 = scmp.le.s32.totalorder 2, %s19
      // Predicated region
      $region49: #{tpu_custom_call.1} parent=5 // pred_check
        %p1407 = pneg %p1406
      $region50: #{tpu_custom_call.1} parent=5 // pred_check_branch
        %1409 = sbr.rel (%p1407) target = $region52
      $region51: #{tpu_custom_call.1} parent=5 // pred_region
        %s1410 = ssub.s32 %s19, 2
        // Predicated region
        $region53: #{tpu_custom_call.1} parent=51 // pred_check
          %p1411 = pneg %p137
        $region54: #{tpu_custom_call.1} parent=51 // pred_check_branch
          %1413 = sbr.rel (%p1411) target = $region56
        $region55: #{tpu_custom_call.1} parent=51 // pred_region
          %s1414 = sand.u32 %s122, 1
          %s1415 = scalar_lea.sflag [#allocation4], %s1414
          %s1416 = sand.u32 %s122, 1
          %s1417 = smul.addr %s1416, 128
          %s1418 = scalar_lea.vmem [#allocation5], %s1417
          %1419 = dma.done %s1415, 2048
        $region56: #{tpu_custom_call.1} parent=51 // pred_fallthru
          _
        // Predicated region
        $region57: #{tpu_custom_call.1} parent=51 // pred_check
          %p1420 = pneg %p163
        $region58: #{tpu_custom_call.1} parent=51 // pred_check_branch
          %1422 = sbr.rel (%p1420) target = $region60
        $region59: #{tpu_custom_call.1} parent=51 // pred_region
          %s1423 = sand.u32 %s148, 1
          %s1424 = scalar_lea.sflag [#allocation7], %s1423
          %s1425 = sand.u32 %s148, 1
          %s1426 = smul.addr %s1425, 128
          %s1427 = scalar_lea.vmem [#allocation6], %s1426
          %1428 = dma.done %s1424, 2048
        $region60: #{tpu_custom_call.1} parent=51 // pred_fallthru
          _
      $region52: #{tpu_custom_call.1} parent=5 // pred_fallthru
        _
    $region6: #{tpu_custom_call.1} parent=1 // loop_footer
      %s23 = sadd.s32 1, %s19
    $region7: #{tpu_custom_call.1} parent=1 // loop_footer_branch
      %18 = sbr.rel target = $region3
    $region8: #{tpu_custom_call.1} parent=1 // loop_exit
      _
    %1429 = vsyncpa [#allocation3], 1
    %s1430 = scalar_lea.sflag [#allocation3], 1
    %1431 = vsyncpa %s1430, 1
    %1432 = vsyncpa [#allocation4], 1
    %s1433 = scalar_lea.sflag [#allocation4], 1
    %1434 = vsyncpa %s1433, 1
    %1435 = vsyncpa [#allocation7], 1
    %s1436 = scalar_lea.sflag [#allocation7], 1
    %1437 = vsyncpa %s1436, 1

</llo_original>
